<compile_context>
chip_gen: v6e
topology: v6e:2x2x1
jax: 0.10.0
libtpu: 0.0.40
codegen_flags: <defaults>
</compile_context>

<pallas_src>
import functools
import numpy as np

import jax
import jax.numpy as jnp
from jax.experimental import pallas as pl
from jax.experimental.pallas import tpu as pltpu


PAD = 0
COMPUTE_DTYPE = jnp.float32  # set to jnp.bfloat16 on v6e/v7x (f32 accumulation kept)


# ----------------------------------------------------------------------------
# Fused MHA sub-layer kernel (per batch element):
#   q = x_q @ Wq' + bq'           (Wq', bq' already scaled by 1/sqrt(d_k))
#   [k|v] = x_kv @ Wkv + bkv      (packed K/V projection)
#   per head: softmax(q_h k_h^T + bias) v_h ; accumulate head's FC contribution
#   out = LayerNorm(fc_out + residual) * non_pad_mask
# ----------------------------------------------------------------------------

def _mha_fused_kernel(q_ref, kv_ref, wq_ref, bq_ref, wkv_ref, bkv_ref,
                      wfc_ref, bfc_ref, g_ref, beta_ref, bias_ref, npad_ref,
                      out_ref, attn_ref, *, n_head, d_k, d_v, eps, cdt):
    x_q = q_ref[0]                     # (Lq, D)   (also the residual)
    x_kv = kv_ref[0]                   # (Lk, D)
    bias = bias_ref[0]                 # (Lq, Lk)  additive mask: 0 or -1e30

    q = jnp.dot(x_q.astype(cdt), wq_ref[...].astype(cdt),
                preferred_element_type=jnp.float32) + bq_ref[...]      # (Lq, H*dk)
    kv = jnp.dot(x_kv.astype(cdt), wkv_ref[...].astype(cdt),
                 preferred_element_type=jnp.float32) + bkv_ref[...]    # (Lk, H*(dk+dv))
    hk = n_head * d_k
    k = kv[:, :hk]
    v = kv[:, hk:]

    wfc = wfc_ref[...]                 # (H*dv, D)
    acc = jnp.zeros((x_q.shape[0], wfc.shape[1]), jnp.float32)

    # static unroll over heads; concat(head_ctx) @ Wfc == sum_h ctx_h @ Wfc[h-block]
    for h in range(n_head):
        qh = q[:, h * d_k:(h + 1) * d_k]
        kh = k[:, h * d_k:(h + 1) * d_k]
        vh = v[:, h * d_v:(h + 1) * d_v]

        s = jax.lax.dot_general(qh, kh, (((1,), (1,)), ((), ())),
                                preferred_element_type=jnp.float32) + bias
        s = s - jnp.max(s, axis=-1, keepdims=True)
        e = jnp.exp(s)
        p = e * pl.reciprocal(jnp.sum(e, axis=-1, keepdims=True), approx=True)

        attn_ref[h, 0] = p             # head-major writeback, no transpose needed

        ctx = jnp.dot(p.astype(cdt), vh.astype(cdt),
                      preferred_element_type=jnp.float32)              # (Lq, dv)
        acc = acc + jnp.dot(ctx.astype(cdt),
                            wfc[h * d_v:(h + 1) * d_v, :].astype(cdt),
                            preferred_element_type=jnp.float32)

    # output FC bias + residual, then LayerNorm (biased var, eps=1e-5) * npad
    y = acc + bfc_ref[...] + x_q
    mu = jnp.mean(y, axis=-1, keepdims=True)
    var = jnp.mean((y - mu) ** 2, axis=-1, keepdims=True)
    yn = (y - mu) * jax.lax.rsqrt(var + eps)
    out_ref[0] = (yn * g_ref[...] + beta_ref[...]) * npad_ref[0]


def mha_sublayer(mp, q_in, kv_in, attn_bias, npad, d_k, d_v):
    """One fused MHA sub-layer. Returns (out (B,Lq,D), attn (H*B,Lq,Lk) head-major)."""
    B, Lq, D = q_in.shape
    Lk = kv_in.shape[1]
    H = mp["n_head"]
    hk, hv = H * d_k, H * d_v

    kern = functools.partial(_mha_fused_kernel, n_head=H, d_k=d_k, d_v=d_v,
                             eps=1e-5, cdt=COMPUTE_DTYPE)
    out, attn = pl.pallas_call(
        kern,
        out_shape=(jax.ShapeDtypeStruct((B, Lq, D), jnp.float32),
                   jax.ShapeDtypeStruct((H, B, Lq, Lk), jnp.float32)),
        grid=(B,),
        in_specs=[
            pl.BlockSpec((1, Lq, D), lambda b: (b, 0, 0)),       # q input
            pl.BlockSpec((1, Lk, D), lambda b: (b, 0, 0)),       # kv input
            pl.BlockSpec((D, hk), lambda b: (0, 0)),             # w_q (pre-scaled)
            pl.BlockSpec((1, hk), lambda b: (0, 0)),             # b_q (pre-scaled)
            pl.BlockSpec((D, hk + hv), lambda b: (0, 0)),        # packed w_kv
            pl.BlockSpec((1, hk + hv), lambda b: (0, 0)),        # packed b_kv
            pl.BlockSpec((hv, D), lambda b: (0, 0)),             # w_fc
            pl.BlockSpec((1, D), lambda b: (0, 0)),              # b_fc
            pl.BlockSpec((1, D), lambda b: (0, 0)),              # ln gamma
            pl.BlockSpec((1, D), lambda b: (0, 0)),              # ln beta
            pl.BlockSpec((1, Lq, Lk), lambda b: (b, 0, 0)),      # additive mask bias
            pl.BlockSpec((1, Lq, 1), lambda b: (b, 0, 0)),       # non-pad mask
        ],
        out_specs=(
            pl.BlockSpec((1, Lq, D), lambda b: (b, 0, 0)),
            pl.BlockSpec((H, 1, Lq, Lk), lambda b: (0, b, 0, 0)),  # head-major layout
        ),
        compiler_params=pltpu.CompilerParams(dimension_semantics=("parallel",)),
    )(q_in, kv_in, mp["w_q"], mp["b_q"], mp["w_kv"], mp["b_kv"],
      mp["w_fc"], mp["b_fc"], mp["ln_g"], mp["ln_b"], attn_bias, npad)

    # already head-major (H, B, Lq, Lk) -> contiguous free reshape to (H*B, Lq, Lk)
    return out, attn.reshape(H * B, Lq, Lk)


# ----------------------------------------------------------------------------
# Fused FFN + residual + LayerNorm + npad kernel over flattened tokens (M, D)
# ----------------------------------------------------------------------------

def _ffn_ln_kernel(x_ref, w1_ref, b1_ref, w2_ref, b2_ref, g_ref, beta_ref,
                   npad_ref, o_ref, *, eps, cdt):
    x = x_ref[...]                                                    # (TM, D)
    h = jnp.dot(x.astype(cdt), w1_ref[...].astype(cdt),
                preferred_element_type=jnp.float32) + b1_ref[...]
    h = jnp.maximum(h, 0.0)
    y = jnp.dot(h.astype(cdt), w2_ref[...].astype(cdt),
                preferred_element_type=jnp.float32) + b2_ref[...]
    y = y + x                                                         # residual
    mu = jnp.mean(y, axis=-1, keepdims=True)
    var = jnp.mean((y - mu) ** 2, axis=-1, keepdims=True)
    yn = (y - mu) * jax.lax.rsqrt(var + eps)
    o_ref[...] = (yn * g_ref[...] + beta_ref[...]) * npad_ref[...]


def _pick_m_tile(m):
    for t in (512, 256, 128):
        if m >= t and m % t == 0:
            return t
    return m


def ffn_ln_sublayer(fp, x, npad):
    B, L, D = x.shape
    M = B * L
    Di = fp["w1"].shape[1]
    x2 = x.reshape(M, D)
    n2 = npad.reshape(M, 1)
    tm = _pick_m_tile(M)

    kern = functools.partial(_ffn_ln_kernel, eps=1e-5, cdt=COMPUTE_DTYPE)
    out2 = pl.pallas_call(
        kern,
        out_shape=jax.ShapeDtypeStruct((M, D), jnp.float32),
        grid=(M // tm,),
        in_specs=[
            pl.BlockSpec((tm, D), lambda i: (i, 0)),
            pl.BlockSpec((D, Di), lambda i: (0, 0)),
            pl.BlockSpec((1, Di), lambda i: (0, 0)),
            pl.BlockSpec((Di, D), lambda i: (0, 0)),
            pl.BlockSpec((1, D), lambda i: (0, 0)),
            pl.BlockSpec((1, D), lambda i: (0, 0)),
            pl.BlockSpec((1, D), lambda i: (0, 0)),
            pl.BlockSpec((tm, 1), lambda i: (i, 0)),
        ],
        out_specs=pl.BlockSpec((tm, D), lambda i: (i, 0)),
        compiler_params=pltpu.CompilerParams(dimension_semantics=("parallel",)),
    )(x2, fp["w1"], fp["b1"], fp["w2"], fp["b2"], fp["ln_g"], fp["ln_b"], n2)
    return out2.reshape(B, L, D)


# ----------------------------------------------------------------------------
# Masks / embeddings (cheap O(B*L) glue, plain JAX)
# ----------------------------------------------------------------------------

def get_non_pad_mask(seq):
    return (seq != PAD).astype(jnp.float32)[:, :, None]               # (B, L, 1)


def get_attn_key_pad_mask(seq_k, seq_q):
    B, Lk = seq_k.shape
    Lq = seq_q.shape[1]
    m = (seq_k == PAD)[:, None, :]
    return jnp.broadcast_to(m, (B, Lq, Lk))                           # bool, True==masked


def get_subsequent_mask(seq):
    B, L = seq.shape
    idx = jnp.arange(L)
    sub = idx[None, :] > idx[:, None]                                 # strictly upper
    return jnp.broadcast_to(sub[None], (B, L, L))


def _mask_to_bias(mask_bool):
    # additive bias: 0 where visible, -1e30 where masked
    return jnp.where(mask_bool, jnp.float32(-1e30), jnp.float32(0.0))


def get_sinusoid_encoding_table(n_position, d_model, padding_idx=None):
    pos = np.arange(n_position, dtype=np.float64)[:, None]
    hid = np.arange(d_model, dtype=np.float64)[None, :]
    angle = pos / np.power(10000.0, 2.0 * (hid // 2) / d_model)
    table = np.zeros((n_position, d_model), dtype=np.float32)
    table[:, 0::2] = np.sin(angle[:, 0::2])
    table[:, 1::2] = np.cos(angle[:, 1::2])
    if padding_idx is not None:
        table[padding_idx] = 0.0
    return jnp.asarray(table)


# ----------------------------------------------------------------------------
# Model: parameter init (packed weights) + forward
# ----------------------------------------------------------------------------

def _init_linear(key, d_in, d_out):
    kw, kb = jax.random.split(key)
    w = jax.random.normal(kw, (d_in, d_out), jnp.float32) * np.sqrt(2.0 / (d_in + d_out))
    b = jax.random.normal(kb, (1, d_out), jnp.float32) * 0.01
    return w, b


def _init_mha(key, n_head, d_model, d_k, d_v):
    ks = jax.random.split(key, 4)
    wq, bq = _init_linear(ks[0], d_model, n_head * d_k)
    wk, bk = _init_linear(ks[1], d_model, n_head * d_k)
    wv, bv = _init_linear(ks[2], d_model, n_head * d_v)
    wf, bf = _init_linear(ks[3], n_head * d_v, d_model)
    inv_temp = 1.0 / np.sqrt(d_k)     # fold 1/sqrt(d_k) into the Q projection
    return dict(
        n_head=n_head,
        w_q=wq * inv_temp, b_q=bq * inv_temp,
        w_kv=jnp.concatenate([wk, wv], axis=1),
        b_kv=jnp.concatenate([bk, bv], axis=1),
        w_fc=wf, b_fc=bf,
        ln_g=jnp.ones((1, d_model), jnp.float32),
        ln_b=jnp.zeros((1, d_model), jnp.float32),
    )


def init_params(key, *, syn_vocab, lvl_vocab, max_seq_len, n_layer,
                n_src_attn_head, n_tmpl_attn_head, d_k, d_v, d_model, d_inner):
    keys = jax.random.split(key, 2 + n_layer)
    syn_emb = jax.random.normal(keys[0], (syn_vocab, d_model), jnp.float32)
    lvl_emb = jax.random.normal(keys[1], (lvl_vocab, d_model), jnp.float32)
    syn_emb = syn_emb.at[PAD].set(0.0)            # padding_idx=0 -> zero row
    lvl_emb = lvl_emb.at[PAD].set(0.0)
    pos_enc = get_sinusoid_encoding_table(max_seq_len + 1, d_model, padding_idx=0)

    layers = []
    for li in range(n_layer):
        lk = jax.random.split(keys[2 + li], 5)
        w1, b1 = _init_linear(lk[3], d_model, d_inner)
        w2, b2 = _init_linear(lk[4], d_inner, d_model)
        layers.append(dict(
            slf=_init_mha(lk[0], n_src_attn_head, d_model, d_k, d_v),
            txt=_init_mha(lk[1], n_src_attn_head, d_model, d_k, d_v),
            syn=_init_mha(lk[2], n_tmpl_attn_head, d_model, d_k, d_v),
            ffn=dict(w1=w1, b1=b1, w2=w2, b2=b2,
                     ln_g=jnp.ones((1, d_model), jnp.float32),
                     ln_b=jnp.zeros((1, d_model), jnp.float32)),
        ))
    return dict(syn_emb=syn_emb, lvl_emb=lvl_emb, pos_enc=pos_enc, layers=layers,
                d_k=d_k, d_v=d_v, d_model=d_model)


def decoder_layer_forward(lp, dec_input, txt_enc_output, syn_enc_output,
                          non_pad_mask, slf_bias, txt_bias, syn_bias, d_k, d_v):
    out, slf_attn = mha_sublayer(lp["slf"], dec_input, dec_input, slf_bias,
                                 non_pad_mask, d_k, d_v)
    out, txt_attn = mha_sublayer(lp["txt"], out, txt_enc_output, txt_bias,
                                 non_pad_mask, d_k, d_v)
    out, tmpl_attn = mha_sublayer(lp["syn"], out, syn_enc_output, syn_bias,
                                  non_pad_mask, d_k, d_v)
    out = ffn_ln_sublayer(lp["ffn"], out, non_pad_mask)
    return out, (slf_attn, txt_attn, tmpl_attn)


def multi_enc_syn_decoder_forward(params, tgt_syn_seq, tgt_lvl_seq, tgt_pos_seq,
                                  src_seq, tmpl_seq, src_enc_output, tmpl_enc_output):
    d_k, d_v = params["d_k"], params["d_v"]

    non_pad_mask = get_non_pad_mask(tgt_syn_seq)
    slf_mask = get_attn_key_pad_mask(tgt_syn_seq, tgt_syn_seq) | get_subsequent_mask(tgt_syn_seq)
    slf_bias = _mask_to_bias(slf_mask)
    txt_bias = _mask_to_bias(get_attn_key_pad_mask(src_seq, tgt_syn_seq))
    syn_bias = _mask_to_bias(get_attn_key_pad_mask(tmpl_seq, tgt_syn_seq))

    dec_output = (jnp.take(params["syn_emb"], tgt_syn_seq, axis=0)
                  + jnp.take(params["lvl_emb"], tgt_lvl_seq, axis=0)
                  + jnp.take(params["pos_enc"], tgt_pos_seq, axis=0))

    slf_list, src_list, tmpl_list = [], [], []
    for lp in params["layers"]:
        dec_output, (a_slf, a_src, a_tmpl) = decoder_layer_forward(
            lp, dec_output, src_enc_output, tmpl_enc_output,
            non_pad_mask, slf_bias, txt_bias, syn_bias, d_k, d_v)
        slf_list.append(a_slf)
        src_list.append(a_src)
        tmpl_list.append(a_tmpl)

    return dec_output, (slf_list, src_list, tmpl_list)


# ----------------------------------------------------------------------------
# main
# ----------------------------------------------------------------------------

if __name__ == "__main__":
    B = 2
    L_TGT, L_SRC, L_TMPL = 8, 8, 8
    D_MODEL, D_INNER = 32, 64
    D_K = D_V = 8
    N_SRC_HEAD, N_TMPL_HEAD = 4, 2
    N_LAYER = 2
    MAX_SEQ_LEN = 16
    SYN_VOCAB, LVL_VOCAB = 12, 6

    root = jax.random.PRNGKey(0)
    k_params, k_src, k_tmpl = jax.random.split(root, 3)

    params = init_params(
        k_params, syn_vocab=SYN_VOCAB, lvl_vocab=LVL_VOCAB, max_seq_len=MAX_SEQ_LEN,
        n_layer=N_LAYER, n_src_attn_head=N_SRC_HEAD, n_tmpl_attn_head=N_TMPL_HEAD,
        d_k=D_K, d_v=D_V, d_model=D_MODEL, d_inner=D_INNER)

    # target sequences (0 == PAD), positions are 1-based for non-pad tokens
    tgt_syn_seq = jnp.array([[3, 5, 2, 7, 4, 0, 0, 0],
                             [1, 2, 3, 4, 5, 6, 7, 0]], jnp.int32)
    tgt_lvl_seq = jnp.where(tgt_syn_seq != 0, (tgt_syn_seq % (LVL_VOCAB - 1)) + 1, 0)
    pos = jnp.arange(1, L_TGT + 1, dtype=jnp.int32)[None, :]
    tgt_pos_seq = jnp.where(tgt_syn_seq != 0, pos, 0)

    src_seq = jnp.array([[2, 4, 6, 8, 1, 3, 0, 0],
                         [9, 7, 5, 3, 1, 0, 0, 0]], jnp.int32)
    tmpl_seq = jnp.array([[1, 3, 5, 7, 0, 0, 0, 0],
                          [2, 4, 6, 8, 10, 1, 0, 0]], jnp.int32)

    src_enc_output = jax.random.normal(k_src, (B, L_SRC, D_MODEL), jnp.float32)
    tmpl_enc_output = jax.random.normal(k_tmpl, (B, L_TMPL, D_MODEL), jnp.float32)

    dec_out, (slf_list, src_list, tmpl_list) = multi_enc_syn_decoder_forward(
        params, tgt_syn_seq, tgt_lvl_seq, tgt_pos_seq,
        src_seq, tmpl_seq, src_enc_output, tmpl_enc_output)

    jax.block_until_ready(dec_out)
    jax.block_until_ready(slf_list[-1])
    jax.block_until_ready(src_list[-1])
    jax.block_until_ready(tmpl_list[-1])

    assert dec_out.shape == (B, L_TGT, D_MODEL)
    assert slf_list[0].shape == (N_SRC_HEAD * B, L_TGT, L_TGT)
    assert src_list[0].shape == (N_SRC_HEAD * B, L_TGT, L_SRC)
    assert tmpl_list[0].shape == (N_TMPL_HEAD * B, L_TGT, L_TMPL)
    assert bool(jnp.all(jnp.isfinite(dec_out)))
    # attention rows with at least one visible key should sum to ~1
    assert bool(jnp.all(jnp.abs(jnp.sum(slf_list[0][:, 0, :], axis=-1) - 1.0) < 1e-2))

    print("KERNEL_OK")
</pallas_src>

<mosaic_0001>
module attributes {stable_mosaic.version = 11 : i64} {
  func.func @_mha_fused_kernel(%arg0: i32, %arg1: memref<1x8x32xf32, #tpu.memory_space<vmem>>, %arg2: memref<1x8x32xf32, #tpu.memory_space<vmem>>, %arg3: memref<32x32xf32, #tpu.memory_space<vmem>>, %arg4: memref<1x32xf32, #tpu.memory_space<vmem>>, %arg5: memref<32x64xf32, #tpu.memory_space<vmem>>, %arg6: memref<1x64xf32, #tpu.memory_space<vmem>>, %arg7: memref<32x32xf32, #tpu.memory_space<vmem>>, %arg8: memref<1x32xf32, #tpu.memory_space<vmem>>, %arg9: memref<1x32xf32, #tpu.memory_space<vmem>>, %arg10: memref<1x32xf32, #tpu.memory_space<vmem>>, %arg11: memref<1x8x8xf32, #tpu.memory_space<vmem>>, %arg12: memref<1x8x1xf32, #tpu.memory_space<vmem>>, %arg13: memref<1x8x32xf32, #tpu.memory_space<vmem>>, %arg14: memref<4x1x8x8xf32, #tpu.memory_space<vmem>>) attributes {dimension_semantics = [#tpu.dimension_semantics<parallel>], iteration_bounds = array<i64: 2>, scalar_prefetch = 0 : i64, scratch_operands = 0 : i64, tpu.core_type = #tpu.core_type<tc>, window_params = [{transform_indices = @transform_0, window_bounds = array<i64: 1, 8, 32>}, {transform_indices = @transform_1, window_bounds = array<i64: 1, 8, 32>}, {pipeline_mode = #tpu.pipeline_mode<synchronous>, transform_indices = @transform_2, window_bounds = array<i64: 32, 32>}, {pipeline_mode = #tpu.pipeline_mode<synchronous>, transform_indices = @transform_3, window_bounds = array<i64: 1, 32>}, {pipeline_mode = #tpu.pipeline_mode<synchronous>, transform_indices = @transform_4, window_bounds = array<i64: 32, 64>}, {pipeline_mode = #tpu.pipeline_mode<synchronous>, transform_indices = @transform_5, window_bounds = array<i64: 1, 64>}, {pipeline_mode = #tpu.pipeline_mode<synchronous>, transform_indices = @transform_6, window_bounds = array<i64: 32, 32>}, {pipeline_mode = #tpu.pipeline_mode<synchronous>, transform_indices = @transform_7, window_bounds = array<i64: 1, 32>}, {pipeline_mode = #tpu.pipeline_mode<synchronous>, transform_indices = @transform_8, window_bounds = array<i64: 1, 32>}, {pipeline_mode = #tpu.pipeline_mode<synchronous>, transform_indices = @transform_9, window_bounds = array<i64: 1, 32>}, {transform_indices = @transform_10, window_bounds = array<i64: 1, 8, 8>}, {transform_indices = @transform_11, window_bounds = array<i64: 1, 8, 1>}, {transform_indices = @transform_12, window_bounds = array<i64: 1, 8, 32>}, {transform_indices = @transform_13, window_bounds = array<i64: 4, 1, 8, 8>}]} {
    %c0 = arith.constant 0 : index
    %c0_0 = arith.constant 0 : index
    %c0_1 = arith.constant 0 : index
    %0 = vector.load %arg1[%c0, %c0_0, %c0_1] : memref<1x8x32xf32, #tpu.memory_space<vmem>>, vector<1x8x32xf32>
    %1 = vector.shape_cast %0 : vector<1x8x32xf32> to vector<8x32xf32>
    %c0_2 = arith.constant 0 : index
    %c0_3 = arith.constant 0 : index
    %c0_4 = arith.constant 0 : index
    %2 = vector.load %arg2[%c0_2, %c0_3, %c0_4] : memref<1x8x32xf32, #tpu.memory_space<vmem>>, vector<1x8x32xf32>
    %3 = vector.shape_cast %2 : vector<1x8x32xf32> to vector<8x32xf32>
    %c0_5 = arith.constant 0 : index
    %c0_6 = arith.constant 0 : index
    %c0_7 = arith.constant 0 : index
    %4 = vector.load %arg11[%c0_5, %c0_6, %c0_7] : memref<1x8x8xf32, #tpu.memory_space<vmem>>, vector<1x8x8xf32>
    %5 = vector.shape_cast %4 : vector<1x8x8xf32> to vector<8x8xf32>
    %c0_8 = arith.constant 0 : index
    %c0_9 = arith.constant 0 : index
    %6 = vector.load %arg3[%c0_8, %c0_9] : memref<32x32xf32, #tpu.memory_space<vmem>>, vector<32x32xf32>
    %cst = arith.constant dense<0.000000e+00> : vector<8x32xf32>
    %7 = tpu.matmul %1, %6, %cst {dimension_numbers = #tpu.dot_dimension_numbers<[1], [0], [0], [1], [0, 0, 1, 1], [], []>} : vector<8x32xf32>, vector<32x32xf32>, vector<8x32xf32> -> vector<8x32xf32>
    %c0_10 = arith.constant 0 : index
    %c0_11 = arith.constant 0 : index
    %8 = vector.load %arg4[%c0_10, %c0_11] : memref<1x32xf32, #tpu.memory_space<vmem>>, vector<1x32xf32>
    %9 = vector.broadcast %8 : vector<1x32xf32> to vector<8x32xf32>
    %10 = arith.addf %7, %9 : vector<8x32xf32>
    %c0_12 = arith.constant 0 : index
    %c0_13 = arith.constant 0 : index
    %11 = vector.load %arg5[%c0_12, %c0_13] : memref<32x64xf32, #tpu.memory_space<vmem>>, vector<32x64xf32>
    %cst_14 = arith.constant dense<0.000000e+00> : vector<8x64xf32>
    %12 = tpu.matmul %3, %11, %cst_14 {dimension_numbers = #tpu.dot_dimension_numbers<[1], [0], [0], [1], [0, 0, 1, 1], [], []>} : vector<8x32xf32>, vector<32x64xf32>, vector<8x64xf32> -> vector<8x64xf32>
    %c0_15 = arith.constant 0 : index
    %c0_16 = arith.constant 0 : index
    %13 = vector.load %arg6[%c0_15, %c0_16] : memref<1x64xf32, #tpu.memory_space<vmem>>, vector<1x64xf32>
    %14 = vector.broadcast %13 : vector<1x64xf32> to vector<8x64xf32>
    %15 = arith.addf %12, %14 : vector<8x64xf32>
    %16 = vector.extract_strided_slice %15 {offsets = [0, 0], sizes = [8, 32], strides = [1, 1]} : vector<8x64xf32> to vector<8x32xf32>
    %17 = vector.extract_strided_slice %15 {offsets = [0, 32], sizes = [8, 32], strides = [1, 1]} : vector<8x64xf32> to vector<8x32xf32>
    %c0_17 = arith.constant 0 : index
    %c0_18 = arith.constant 0 : index
    %18 = vector.load %arg7[%c0_17, %c0_18] : memref<32x32xf32, #tpu.memory_space<vmem>>, vector<32x32xf32>
    %cst_19 = arith.constant 0.000000e+00 : f32
    %19 = vector.broadcast %cst_19 : f32 to vector<8x32xf32>
    %20 = vector.extract_strided_slice %10 {offsets = [0, 0], sizes = [8, 8], strides = [1, 1]} : vector<8x32xf32> to vector<8x8xf32>
    %21 = vector.extract_strided_slice %16 {offsets = [0, 0], sizes = [8, 8], strides = [1, 1]} : vector<8x32xf32> to vector<8x8xf32>
    %22 = vector.extract_strided_slice %17 {offsets = [0, 0], sizes = [8, 8], strides = [1, 1]} : vector<8x32xf32> to vector<8x8xf32>
    %cst_20 = arith.constant dense<0.000000e+00> : vector<8x8xf32>
    %23 = tpu.matmul %20, %21, %cst_20 {dimension_numbers = #tpu.dot_dimension_numbers<[1], [1], [0], [0], [0, 0, 1, 0], [], []>} : vector<8x8xf32>, vector<8x8xf32>, vector<8x8xf32> -> vector<8x8xf32>
    %24 = arith.addf %23, %5 : vector<8x8xf32>
    %cst_21 = arith.constant dense<0xFF800000> : vector<8xf32>
    %25 = vector.multi_reduction <maximumf>, %24, %cst_21 [1] : vector<8x8xf32> to vector<8xf32>
    %26 = vector.shape_cast %25 : vector<8xf32> to vector<8x1xf32>
    %27 = vector.broadcast %26 : vector<8x1xf32> to vector<8x8xf32>
    %28 = arith.subf %24, %27 : vector<8x8xf32>
    %29 = math.exp %28 : vector<8x8xf32>
    %cst_22 = arith.constant dense<0.000000e+00> : vector<8xf32>
    %30 = vector.multi_reduction <add>, %29, %cst_22 [1] : vector<8x8xf32> to vector<8xf32>
    %31 = vector.shape_cast %30 : vector<8xf32> to vector<8x1xf32>
    %32 = tpu.reciprocal %31 {approx = true} : vector<8x1xf32> -> vector<8x1xf32>
    %33 = vector.broadcast %32 : vector<8x1xf32> to vector<8x8xf32>
    %34 = arith.mulf %29, %33 : vector<8x8xf32>
    %c0_23 = arith.constant 0 : index
    %c0_24 = arith.constant 0 : index
    %c0_25 = arith.constant 0 : index
    %c0_26 = arith.constant 0 : index
    %35 = vector.load %arg14[%c0_23, %c0_24, %c0_25, %c0_26] : memref<4x1x8x8xf32, #tpu.memory_space<vmem>>, vector<1x1x8x8xf32>
    %36 = vector.shape_cast %35 : vector<1x1x8x8xf32> to vector<8x8xf32>
    %37 = vector.shape_cast %34 : vector<8x8xf32> to vector<1x1x8x8xf32>
    tpu.vector_store %arg14[%c0_23, %c0_24, %c0_25, %c0_26], %37 {strides = array<i32>} : memref<4x1x8x8xf32, #tpu.memory_space<vmem>>, vector<1x1x8x8xf32>,
    %cst_27 = arith.constant dense<0.000000e+00> : vector<8x8xf32>
    %38 = tpu.matmul %34, %22, %cst_27 {dimension_numbers = #tpu.dot_dimension_numbers<[1], [0], [0], [1], [0, 0, 1, 1], [], []>} : vector<8x8xf32>, vector<8x8xf32>, vector<8x8xf32> -> vector<8x8xf32>
    %39 = vector.extract_strided_slice %18 {offsets = [0, 0], sizes = [8, 32], strides = [1, 1]} : vector<32x32xf32> to vector<8x32xf32>
    %cst_28 = arith.constant dense<0.000000e+00> : vector<8x32xf32>
    %40 = tpu.matmul %38, %39, %cst_28 {dimension_numbers = #tpu.dot_dimension_numbers<[1], [0], [0], [1], [0, 0, 1, 1], [], []>} : vector<8x8xf32>, vector<8x32xf32>, vector<8x32xf32> -> vector<8x32xf32>
    %41 = arith.addf %19, %40 : vector<8x32xf32>
    %42 = vector.extract_strided_slice %10 {offsets = [0, 8], sizes = [8, 8], strides = [1, 1]} : vector<8x32xf32> to vector<8x8xf32>
    %43 = vector.extract_strided_slice %16 {offsets = [0, 8], sizes = [8, 8], strides = [1, 1]} : vector<8x32xf32> to vector<8x8xf32>
    %44 = vector.extract_strided_slice %17 {offsets = [0, 8], sizes = [8, 8], strides = [1, 1]} : vector<8x32xf32> to vector<8x8xf32>
    %cst_29 = arith.constant dense<0.000000e+00> : vector<8x8xf32>
    %45 = tpu.matmul %42, %43, %cst_29 {dimension_numbers = #tpu.dot_dimension_numbers<[1], [1], [0], [0], [0, 0, 1, 0], [], []>} : vector<8x8xf32>, vector<8x8xf32>, vector<8x8xf32> -> vector<8x8xf32>
    %46 = arith.addf %45, %5 : vector<8x8xf32>
    %cst_30 = arith.constant dense<0xFF800000> : vector<8xf32>
    %47 = vector.multi_reduction <maximumf>, %46, %cst_30 [1] : vector<8x8xf32> to vector<8xf32>
    %48 = vector.shape_cast %47 : vector<8xf32> to vector<8x1xf32>
    %49 = vector.broadcast %48 : vector<8x1xf32> to vector<8x8xf32>
    %50 = arith.subf %46, %49 : vector<8x8xf32>
    %51 = math.exp %50 : vector<8x8xf32>
    %cst_31 = arith.constant dense<0.000000e+00> : vector<8xf32>
    %52 = vector.multi_reduction <add>, %51, %cst_31 [1] : vector<8x8xf32> to vector<8xf32>
    %53 = vector.shape_cast %52 : vector<8xf32> to vector<8x1xf32>
    %54 = tpu.reciprocal %53 {approx = true} : vector<8x1xf32> -> vector<8x1xf32>
    %55 = vector.broadcast %54 : vector<8x1xf32> to vector<8x8xf32>
    %56 = arith.mulf %51, %55 : vector<8x8xf32>
    %c1 = arith.constant 1 : index
    %c0_32 = arith.constant 0 : index
    %c0_33 = arith.constant 0 : index
    %c0_34 = arith.constant 0 : index
    %57 = vector.load %arg14[%c1, %c0_32, %c0_33, %c0_34] : memref<4x1x8x8xf32, #tpu.memory_space<vmem>>, vector<1x1x8x8xf32>
    %58 = vector.shape_cast %57 : vector<1x1x8x8xf32> to vector<8x8xf32>
    %59 = vector.shape_cast %56 : vector<8x8xf32> to vector<1x1x8x8xf32>
    tpu.vector_store %arg14[%c1, %c0_32, %c0_33, %c0_34], %59 {strides = array<i32>} : memref<4x1x8x8xf32, #tpu.memory_space<vmem>>, vector<1x1x8x8xf32>,
    %cst_35 = arith.constant dense<0.000000e+00> : vector<8x8xf32>
    %60 = tpu.matmul %56, %44, %cst_35 {dimension_numbers = #tpu.dot_dimension_numbers<[1], [0], [0], [1], [0, 0, 1, 1], [], []>} : vector<8x8xf32>, vector<8x8xf32>, vector<8x8xf32> -> vector<8x8xf32>
    %61 = vector.extract_strided_slice %18 {offsets = [8, 0], sizes = [8, 32], strides = [1, 1]} : vector<32x32xf32> to vector<8x32xf32>
    %cst_36 = arith.constant dense<0.000000e+00> : vector<8x32xf32>
    %62 = tpu.matmul %60, %61, %cst_36 {dimension_numbers = #tpu.dot_dimension_numbers<[1], [0], [0], [1], [0, 0, 1, 1], [], []>} : vector<8x8xf32>, vector<8x32xf32>, vector<8x32xf32> -> vector<8x32xf32>
    %63 = arith.addf %41, %62 : vector<8x32xf32>
    %64 = vector.extract_strided_slice %10 {offsets = [0, 16], sizes = [8, 8], strides = [1, 1]} : vector<8x32xf32> to vector<8x8xf32>
    %65 = vector.extract_strided_slice %16 {offsets = [0, 16], sizes = [8, 8], strides = [1, 1]} : vector<8x32xf32> to vector<8x8xf32>
    %66 = vector.extract_strided_slice %17 {offsets = [0, 16], sizes = [8, 8], strides = [1, 1]} : vector<8x32xf32> to vector<8x8xf32>
    %cst_37 = arith.constant dense<0.000000e+00> : vector<8x8xf32>
    %67 = tpu.matmul %64, %65, %cst_37 {dimension_numbers = #tpu.dot_dimension_numbers<[1], [1], [0], [0], [0, 0, 1, 0], [], []>} : vector<8x8xf32>, vector<8x8xf32>, vector<8x8xf32> -> vector<8x8xf32>
    %68 = arith.addf %67, %5 : vector<8x8xf32>
    %cst_38 = arith.constant dense<0xFF800000> : vector<8xf32>
    %69 = vector.multi_reduction <maximumf>, %68, %cst_38 [1] : vector<8x8xf32> to vector<8xf32>
    %70 = vector.shape_cast %69 : vector<8xf32> to vector<8x1xf32>
    %71 = vector.broadcast %70 : vector<8x1xf32> to vector<8x8xf32>
    %72 = arith.subf %68, %71 : vector<8x8xf32>
    %73 = math.exp %72 : vector<8x8xf32>
    %cst_39 = arith.constant dense<0.000000e+00> : vector<8xf32>
    %74 = vector.multi_reduction <add>, %73, %cst_39 [1] : vector<8x8xf32> to vector<8xf32>
    %75 = vector.shape_cast %74 : vector<8xf32> to vector<8x1xf32>
    %76 = tpu.reciprocal %75 {approx = true} : vector<8x1xf32> -> vector<8x1xf32>
    %77 = vector.broadcast %76 : vector<8x1xf32> to vector<8x8xf32>
    %78 = arith.mulf %73, %77 : vector<8x8xf32>
    %c2 = arith.constant 2 : index
    %c0_40 = arith.constant 0 : index
    %c0_41 = arith.constant 0 : index
    %c0_42 = arith.constant 0 : index
    %79 = vector.load %arg14[%c2, %c0_40, %c0_41, %c0_42] : memref<4x1x8x8xf32, #tpu.memory_space<vmem>>, vector<1x1x8x8xf32>
    %80 = vector.shape_cast %79 : vector<1x1x8x8xf32> to vector<8x8xf32>
    %81 = vector.shape_cast %78 : vector<8x8xf32> to vector<1x1x8x8xf32>
    tpu.vector_store %arg14[%c2, %c0_40, %c0_41, %c0_42], %81 {strides = array<i32>} : memref<4x1x8x8xf32, #tpu.memory_space<vmem>>, vector<1x1x8x8xf32>,
    %cst_43 = arith.constant dense<0.000000e+00> : vector<8x8xf32>
    %82 = tpu.matmul %78, %66, %cst_43 {dimension_numbers = #tpu.dot_dimension_numbers<[1], [0], [0], [1], [0, 0, 1, 1], [], []>} : vector<8x8xf32>, vector<8x8xf32>, vector<8x8xf32> -> vector<8x8xf32>
    %83 = vector.extract_strided_slice %18 {offsets = [16, 0], sizes = [8, 32], strides = [1, 1]} : vector<32x32xf32> to vector<8x32xf32>
    %cst_44 = arith.constant dense<0.000000e+00> : vector<8x32xf32>
    %84 = tpu.matmul %82, %83, %cst_44 {dimension_numbers = #tpu.dot_dimension_numbers<[1], [0], [0], [1], [0, 0, 1, 1], [], []>} : vector<8x8xf32>, vector<8x32xf32>, vector<8x32xf32> -> vector<8x32xf32>
    %85 = arith.addf %63, %84 : vector<8x32xf32>
    %86 = vector.extract_strided_slice %10 {offsets = [0, 24], sizes = [8, 8], strides = [1, 1]} : vector<8x32xf32> to vector<8x8xf32>
    %87 = vector.extract_strided_slice %16 {offsets = [0, 24], sizes = [8, 8], strides = [1, 1]} : vector<8x32xf32> to vector<8x8xf32>
    %88 = vector.extract_strided_slice %17 {offsets = [0, 24], sizes = [8, 8], strides = [1, 1]} : vector<8x32xf32> to vector<8x8xf32>
    %cst_45 = arith.constant dense<0.000000e+00> : vector<8x8xf32>
    %89 = tpu.matmul %86, %87, %cst_45 {dimension_numbers = #tpu.dot_dimension_numbers<[1], [1], [0], [0], [0, 0, 1, 0], [], []>} : vector<8x8xf32>, vector<8x8xf32>, vector<8x8xf32> -> vector<8x8xf32>
    %90 = arith.addf %89, %5 : vector<8x8xf32>
    %cst_46 = arith.constant dense<0xFF800000> : vector<8xf32>
    %91 = vector.multi_reduction <maximumf>, %90, %cst_46 [1] : vector<8x8xf32> to vector<8xf32>
    %92 = vector.shape_cast %91 : vector<8xf32> to vector<8x1xf32>
    %93 = vector.broadcast %92 : vector<8x1xf32> to vector<8x8xf32>
    %94 = arith.subf %90, %93 : vector<8x8xf32>
    %95 = math.exp %94 : vector<8x8xf32>
    %cst_47 = arith.constant dense<0.000000e+00> : vector<8xf32>
    %96 = vector.multi_reduction <add>, %95, %cst_47 [1] : vector<8x8xf32> to vector<8xf32>
    %97 = vector.shape_cast %96 : vector<8xf32> to vector<8x1xf32>
    %98 = tpu.reciprocal %97 {approx = true} : vector<8x1xf32> -> vector<8x1xf32>
    %99 = vector.broadcast %98 : vector<8x1xf32> to vector<8x8xf32>
    %100 = arith.mulf %95, %99 : vector<8x8xf32>
    %c3 = arith.constant 3 : index
    %c0_48 = arith.constant 0 : index
    %c0_49 = arith.constant 0 : index
    %c0_50 = arith.constant 0 : index
    %101 = vector.load %arg14[%c3, %c0_48, %c0_49, %c0_50] : memref<4x1x8x8xf32, #tpu.memory_space<vmem>>, vector<1x1x8x8xf32>
    %102 = vector.shape_cast %101 : vector<1x1x8x8xf32> to vector<8x8xf32>
    %103 = vector.shape_cast %100 : vector<8x8xf32> to vector<1x1x8x8xf32>
    tpu.vector_store %arg14[%c3, %c0_48, %c0_49, %c0_50], %103 {strides = array<i32>} : memref<4x1x8x8xf32, #tpu.memory_space<vmem>>, vector<1x1x8x8xf32>,
    %cst_51 = arith.constant dense<0.000000e+00> : vector<8x8xf32>
    %104 = tpu.matmul %100, %88, %cst_51 {dimension_numbers = #tpu.dot_dimension_numbers<[1], [0], [0], [1], [0, 0, 1, 1], [], []>} : vector<8x8xf32>, vector<8x8xf32>, vector<8x8xf32> -> vector<8x8xf32>
    %105 = vector.extract_strided_slice %18 {offsets = [24, 0], sizes = [8, 32], strides = [1, 1]} : vector<32x32xf32> to vector<8x32xf32>
    %cst_52 = arith.constant dense<0.000000e+00> : vector<8x32xf32>
    %106 = tpu.matmul %104, %105, %cst_52 {dimension_numbers = #tpu.dot_dimension_numbers<[1], [0], [0], [1], [0, 0, 1, 1], [], []>} : vector<8x8xf32>, vector<8x32xf32>, vector<8x32xf32> -> vector<8x32xf32>
    %107 = arith.addf %85, %106 : vector<8x32xf32>
    %c0_53 = arith.constant 0 : index
    %c0_54 = arith.constant 0 : index
    %108 = vector.load %arg8[%c0_53, %c0_54] : memref<1x32xf32, #tpu.memory_space<vmem>>, vector<1x32xf32>
    %109 = vector.broadcast %108 : vector<1x32xf32> to vector<8x32xf32>
    %110 = arith.addf %107, %109 : vector<8x32xf32>
    %111 = arith.addf %110, %1 : vector<8x32xf32>
    %cst_55 = arith.constant dense<0.000000e+00> : vector<8xf32>
    %112 = vector.multi_reduction <add>, %111, %cst_55 [1] : vector<8x32xf32> to vector<8xf32>
    %113 = vector.shape_cast %112 : vector<8xf32> to vector<8x1xf32>
    %cst_56 = arith.constant 3.200000e+01 : f32
    %114 = vector.broadcast %cst_56 : f32 to vector<8x1xf32>
    %115 = arith.divf %113, %114 : vector<8x1xf32>
    %116 = vector.broadcast %115 : vector<8x1xf32> to vector<8x32xf32>
    %117 = arith.subf %111, %116 : vector<8x32xf32>
    %118 = arith.mulf %117, %117 : vector<8x32xf32>
    %cst_57 = arith.constant dense<0.000000e+00> : vector<8xf32>
    %119 = vector.multi_reduction <add>, %118, %cst_57 [1] : vector<8x32xf32> to vector<8xf32>
    %120 = vector.shape_cast %119 : vector<8xf32> to vector<8x1xf32>
    %cst_58 = arith.constant 3.200000e+01 : f32
    %121 = vector.broadcast %cst_58 : f32 to vector<8x1xf32>
    %122 = arith.divf %120, %121 : vector<8x1xf32>
    %123 = vector.broadcast %115 : vector<8x1xf32> to vector<8x32xf32>
    %124 = arith.subf %111, %123 : vector<8x32xf32>
    %cst_59 = arith.constant 9.99999974E-6 : f32
    %125 = vector.broadcast %cst_59 : f32 to vector<8x1xf32>
    %126 = arith.addf %122, %125 : vector<8x1xf32>
    %127 = math.rsqrt %126 : vector<8x1xf32>
    %128 = vector.broadcast %127 : vector<8x1xf32> to vector<8x32xf32>
    %129 = arith.mulf %124, %128 : vector<8x32xf32>
    %c0_60 = arith.constant 0 : index
    %c0_61 = arith.constant 0 : index
    %130 = vector.load %arg9[%c0_60, %c0_61] : memref<1x32xf32, #tpu.memory_space<vmem>>, vector<1x32xf32>
    %131 = vector.broadcast %130 : vector<1x32xf32> to vector<8x32xf32>
    %132 = arith.mulf %129, %131 : vector<8x32xf32>
    %c0_62 = arith.constant 0 : index
    %c0_63 = arith.constant 0 : index
    %133 = vector.load %arg10[%c0_62, %c0_63] : memref<1x32xf32, #tpu.memory_space<vmem>>, vector<1x32xf32>
    %134 = vector.broadcast %133 : vector<1x32xf32> to vector<8x32xf32>
    %135 = arith.addf %132, %134 : vector<8x32xf32>
    %c0_64 = arith.constant 0 : index
    %c0_65 = arith.constant 0 : index
    %c0_66 = arith.constant 0 : index
    %136 = vector.load %arg12[%c0_64, %c0_65, %c0_66] : memref<1x8x1xf32, #tpu.memory_space<vmem>>, vector<1x8x1xf32>
    %137 = vector.shape_cast %136 : vector<1x8x1xf32> to vector<8x1xf32>
    %138 = vector.broadcast %137 : vector<8x1xf32> to vector<8x32xf32>
    %139 = arith.mulf %135, %138 : vector<8x32xf32>
    %c0_67 = arith.constant 0 : index
    %c0_68 = arith.constant 0 : index
    %c0_69 = arith.constant 0 : index
    %140 = vector.load %arg13[%c0_67, %c0_68, %c0_69] : memref<1x8x32xf32, #tpu.memory_space<vmem>>, vector<1x8x32xf32>
    %141 = vector.shape_cast %140 : vector<1x8x32xf32> to vector<8x32xf32>
    %142 = vector.shape_cast %139 : vector<8x32xf32> to vector<1x8x32xf32>
    tpu.vector_store %arg13[%c0_67, %c0_68, %c0_69], %142 {strides = array<i32>} : memref<1x8x32xf32, #tpu.memory_space<vmem>>, vector<1x8x32xf32>,
    return
  }
  func.func @transform_0(%arg0: i32) -> (i32, i32, i32) {
    %c0_i32 = arith.constant 0 : i32
    %c0_i32_0 = arith.constant 0 : i32
    %c0_i32_1 = arith.constant 0 : i32
    return %arg0, %c0_i32, %c0_i32_0 : i32, i32, i32
  }
  func.func @transform_1(%arg0: i32) -> (i32, i32, i32) {
    %c0_i32 = arith.constant 0 : i32
    %c0_i32_0 = arith.constant 0 : i32
    %c0_i32_1 = arith.constant 0 : i32
    return %arg0, %c0_i32, %c0_i32_0 : i32, i32, i32
  }
  func.func @transform_2(%arg0: i32) -> (i32, i32) {
    %c0_i32 = arith.constant 0 : i32
    %c0_i32_0 = arith.constant 0 : i32
    %c0_i32_1 = arith.constant 0 : i32
    return %c0_i32, %c0_i32_0 : i32, i32
  }
  func.func @transform_3(%arg0: i32) -> (i32, i32) {
    %c0_i32 = arith.constant 0 : i32
    %c0_i32_0 = arith.constant 0 : i32
    %c0_i32_1 = arith.constant 0 : i32
    return %c0_i32, %c0_i32_0 : i32, i32
  }
  func.func @transform_4(%arg0: i32) -> (i32, i32) {
    %c0_i32 = arith.constant 0 : i32
    %c0_i32_0 = arith.constant 0 : i32
    %c0_i32_1 = arith.constant 0 : i32
    return %c0_i32, %c0_i32_0 : i32, i32
  }
  func.func @transform_5(%arg0: i32) -> (i32, i32) {
    %c0_i32 = arith.constant 0 : i32
    %c0_i32_0 = arith.constant 0 : i32
    %c0_i32_1 = arith.constant 0 : i32
    return %c0_i32, %c0_i32_0 : i32, i32
  }
  func.func @transform_6(%arg0: i32) -> (i32, i32) {
    %c0_i32 = arith.constant 0 : i32
    %c0_i32_0 = arith.constant 0 : i32
    %c0_i32_1 = arith.constant 0 : i32
    return %c0_i32, %c0_i32_0 : i32, i32
  }
  func.func @transform_7(%arg0: i32) -> (i32, i32) {
    %c0_i32 = arith.constant 0 : i32
    %c0_i32_0 = arith.constant 0 : i32
    %c0_i32_1 = arith.constant 0 : i32
    return %c0_i32, %c0_i32_0 : i32, i32
  }
  func.func @transform_8(%arg0: i32) -> (i32, i32) {
    %c0_i32 = arith.constant 0 : i32
    %c0_i32_0 = arith.constant 0 : i32
    %c0_i32_1 = arith.constant 0 : i32
    return %c0_i32, %c0_i32_0 : i32, i32
  }
  func.func @transform_9(%arg0: i32) -> (i32, i32) {
    %c0_i32 = arith.constant 0 : i32
    %c0_i32_0 = arith.constant 0 : i32
    %c0_i32_1 = arith.constant 0 : i32
    return %c0_i32, %c0_i32_0 : i32, i32
  }
  func.func @transform_10(%arg0: i32) -> (i32, i32, i32) {
    %c0_i32 = arith.constant 0 : i32
    %c0_i32_0 = arith.constant 0 : i32
    %c0_i32_1 = arith.constant 0 : i32
    return %arg0, %c0_i32, %c0_i32_0 : i32, i32, i32
  }
  func.func @transform_11(%arg0: i32) -> (i32, i32, i32) {
    %c0_i32 = arith.constant 0 : i32
    %c0_i32_0 = arith.constant 0 : i32
    %c0_i32_1 = arith.constant 0 : i32
    return %arg0, %c0_i32, %c0_i32_0 : i32, i32, i32
  }
  func.func @transform_12(%arg0: i32) -> (i32, i32, i32) {
    %c0_i32 = arith.constant 0 : i32
    %c0_i32_0 = arith.constant 0 : i32
    %c0_i32_1 = arith.constant 0 : i32
    return %arg0, %c0_i32, %c0_i32_0 : i32, i32, i32
  }
  func.func @transform_13(%arg0: i32) -> (i32, i32, i32, i32) {
    %c0_i32 = arith.constant 0 : i32
    %c0_i32_0 = arith.constant 0 : i32
    %c0_i32_1 = arith.constant 0 : i32
    %c0_i32_2 = arith.constant 0 : i32
    return %c0_i32, %arg0, %c0_i32_0, %c0_i32_1 : i32, i32, i32, i32
  }
}

</mosaic_0001>

<llo_original>
// kernel: tpu_custom_call.1
$region0: #{tpu_custom_call.1}
  #allocation0 [shape = 'u32[]', space=smem, size = 0x4, offset = 0x4, fixed_abs, tag = 'smem constant byte address 0x4 - core index']
  #allocation1 [shape = 'u32[144,128]{1,0:T(1,128)}', space=vmem, size = 0x12000, scoped, tag = 'internal scratch']
  %s0 = inlined_call_operand.vmem [shape: f32[2,8,32], index: 0, kind: input, shape index: {}]
  %s1 = inlined_call_operand.hbm [shape: f32[2,8,32], index: 1, kind: input, shape index: {}]
  %s2 = inlined_call_operand.hbm [shape: f32[32,32], index: 2, kind: input, shape index: {}]
  %s3 = inlined_call_operand.hbm [shape: f32[1,32], index: 3, kind: input, shape index: {}]
  %s4 = inlined_call_operand.hbm [shape: f32[32,64], index: 4, kind: input, shape index: {}]
  %s5 = inlined_call_operand.hbm [shape: f32[1,64], index: 5, kind: input, shape index: {}]
  %s6 = inlined_call_operand.hbm [shape: f32[32,32], index: 6, kind: input, shape index: {}]
  %s7 = inlined_call_operand.hbm [shape: f32[1,32], index: 7, kind: input, shape index: {}]
  %s8 = inlined_call_operand.hbm [shape: f32[1,32], index: 8, kind: input, shape index: {}]
  %s9 = inlined_call_operand.hbm [shape: f32[1,32], index: 9, kind: input, shape index: {}]
  %s10 = inlined_call_operand.vmem [shape: f32[2,8,8], index: 10, kind: input, shape index: {}]
  %s11 = inlined_call_operand.vmem [shape: f32[2,8,1], index: 11, kind: input, shape index: {}]
  %s12 = inlined_call_operand.hbm [shape: f32[2,8,32], index: 12, kind: output, shape index: {0}]
  %s13 = inlined_call_operand.hbm [shape: f32[4,2,8,8], index: 13, kind: output, shape index: {1}]
  %14 = xla_tuple %s12, %s13
  %s15 = sld [smem:[#allocation0]]
  $region125: #{tpu_custom_call.1} parent=0
    _
  %s17 = ssub.s32 1, %s15
  %s18 = scalar_select 0, %s17, %s15
  $region1: #{tpu_custom_call.1} parent=0
    #allocation2 [shape = 'u8[8192]{0}', space=vmem, size = 0x2000, scoped, tag = 'input window, operand 1']
    #allocation3 [shape = 's32[2]{0}', space=sflag, size = 0x8, scoped, tag = 'scoped memory for tpu_custom_call.1']
    #allocation4 [shape = 's32[2]{0}', space=sflag, size = 0x8, scoped, tag = 'scoped memory for tpu_custom_call.1']
    #allocation5 [shape = 'u8[16384]{0}', space=vmem, size = 0x4000, scoped, tag = 'input window, operand 2, single buffered']
    #allocation6 [shape = 's32[1]{0}', space=sflag, size = 0x4, scoped, tag = 'scoped memory for tpu_custom_call.1']
    #allocation7 [shape = 'u8[512]{0}', space=vmem, size = 0x400, scoped, tag = 'input window, operand 3, single buffered']
    #allocation8 [shape = 'u8[16384]{0}', space=vmem, size = 0x4000, scoped, tag = 'input window, operand 4, single buffered']
    #allocation9 [shape = 's32[1]{0}', space=sflag, size = 0x4, scoped, tag = 'scoped memory for tpu_custom_call.1']
    #allocation10 [shape = 'u8[512]{0}', space=vmem, size = 0x400, scoped, tag = 'input window, operand 5, single buffered']
    #allocation11 [shape = 'u8[16384]{0}', space=vmem, size = 0x4000, scoped, tag = 'input window, operand 6, single buffered']
    #allocation12 [shape = 's32[1]{0}', space=sflag, size = 0x4, scoped, tag = 'scoped memory for tpu_custom_call.1']
    #allocation13 [shape = 'u8[512]{0}', space=vmem, size = 0x400, scoped, tag = 'input window, operand 7, single buffered']
    #allocation14 [shape = 'u8[512]{0}', space=vmem, size = 0x400, scoped, tag = 'input window, operand 8, single buffered']
    #allocation15 [shape = 's32[1]{0}', space=sflag, size = 0x4, scoped, tag = 'scoped memory for tpu_custom_call.1']
    #allocation16 [shape = 'u8[512]{0}', space=vmem, size = 0x400, scoped, tag = 'input window, operand 9, single buffered']
    #allocation17 [shape = 'u8[8192]{0}', space=vmem, size = 0x2000, scoped, tag = 'output window, operand 0']
    #allocation18 [shape = 'u8[32768]{0}', space=vmem, size = 0x8000, scoped, tag = 'output window, operand 1']
    #allocation19 [shape = 's32[2]{0}', space=sflag, size = 0x8, scoped, tag = 'scoped memory for tpu_custom_call.1']
    %19 = vsyncpa [#allocation3], 0
    %s20 = scalar_lea.sflag [#allocation3], 1
    %21 = vsyncpa %s20, 0
    %22 = vsyncpa [#allocation6], 0
    %23 = vsyncpa [#allocation9], 0
    %24 = vsyncpa [#allocation12], 0
    %25 = vsyncpa [#allocation15], 0
    %26 = vsyncpa [#allocation4], 0
    %s27 = scalar_lea.sflag [#allocation4], 1
    %28 = vsyncpa %s27, 0
    %29 = vsyncpa [#allocation19], 0
    %s30 = scalar_lea.sflag [#allocation19], 1
    %31 = vsyncpa %s30, 0
    loop: start=0, step=1, limit=4
    $region2: #{tpu_custom_call.1} parent=1 // loop_pre_header
      _
    $region3: #{tpu_custom_call.1} parent=1 // loop_header
      %s33 = sphi 0, %s37
      %p34 = scmp.ge.s32.totalorder %s33, 4
      %s43 = sphi 0, %s45
      %s46 = sphi 0, %s43
      %s47 = sphi 0, %s46
      %s63 = sphi 0, %s47
      %s69 = sphi 0, %s71
      %s72 = sphi 0, %s69
      %s73 = sphi 0, %s72
      %s89 = sphi 0, %s73
      %s93 = sphi 0, %s93
      %s95 = sphi 0, %s93
      %s96 = sphi 0, %s95
      %s110 = sphi 0, %s96
      %s114 = sphi 0, %s114
      %s116 = sphi 0, %s114
      %s117 = sphi 0, %s116
      %s131 = sphi 0, %s117
      %s135 = sphi 0, %s135
      %s137 = sphi 0, %s135
      %s138 = sphi 0, %s137
      %s152 = sphi 0, %s138
      %s156 = sphi 0, %s156
      %s158 = sphi 0, %s156
      %s159 = sphi 0, %s158
      %s173 = sphi 0, %s159
      %s177 = sphi 0, %s177
      %s179 = sphi 0, %s177
      %s180 = sphi 0, %s179
      %s194 = sphi 0, %s180
      %s198 = sphi 0, %s198
      %s200 = sphi 0, %s198
      %s201 = sphi 0, %s200
      %s215 = sphi 0, %s201
      %s219 = sphi 0, %s219
      %s221 = sphi 0, %s219
      %s222 = sphi 0, %s221
      %s236 = sphi 0, %s222
      %s240 = sphi 0, %s240
      %s242 = sphi 0, %s240
      %s243 = sphi 0, %s242
      %s257 = sphi 0, %s243
      %s263 = sphi 0, %s265
      %s266 = sphi 0, %s263
      %s267 = sphi 0, %s266
      %s283 = sphi 0, %s267
      %s289 = sphi 0, %s291
      %s292 = sphi 0, %s289
      %s293 = sphi 0, %s292
      %s309 = sphi 0, %s293
      %s315 = sphi 0, %s317
      %s318 = sphi 0, %s315
      %s319 = sphi 0, %s318
      %s335 = sphi 0, %s319
      %s341 = sphi 0, %s343
      %s344 = sphi 0, %s341
      %s345 = sphi 0, %s344
      %s361 = sphi 0, %s345
    $region4: #{tpu_custom_call.1} parent=1 // loop_header_branch
      %36 = sbr.rel (%p34) target = $region8
    $region5: #{tpu_custom_call.1} parent=1 // loop_body
      %s38 = ssub.s32 %s33, 1
      %s39 = ssub.s32 %s33, 2
      %s40 = sadd.s32 %s33, 1
      %s41 = ssub.s32 %s33, %s40
      %p42 = scmp.eq.s32.totalorder %s41, 0
      %s44 = sadd.s32 %s43, 1
      %s45 = scalar_select %p42, %s43, %s44
      %p48 = pneg %p42
      %p49 = scmp.eq.s32.totalorder %s33, 1
      %p50 = por %p48, %p49
      %p51 = scmp.ne.s32.totalorder %s43, %s46
      %p52 = scmp.eq.s32.totalorder %s33, 0
      %p53 = por %p51, %p52
      %p54 = scmp.ne.s32.totalorder %s43, %s46
      %p55 = scmp.eq.s32.totalorder %s38, 1
      %p56 = por %p54, %p55
      %p57 = scmp.ne.s32.totalorder %s46, %s47
      %p58 = scmp.eq.s32.totalorder %s38, 0
      %p59 = por %p57, %p58
      %p60 = scmp.ne.s32.totalorder %s46, %s47
      %p61 = scmp.eq.s32.totalorder %s39, 1
      %p62 = por %p60, %p61
      %p64 = scmp.ne.s32.totalorder %s47, %s63
      %p65 = scmp.eq.s32.totalorder %s39, 0
      %p66 = por %p64, %p65
      %s67 = ssub.s32 %s33, %s40
      %p68 = scmp.eq.s32.totalorder %s67, 0
      %s70 = sadd.s32 %s69, 1
      %s71 = scalar_select %p68, %s69, %s70
      %p74 = pneg %p68
      %p75 = scmp.eq.s32.totalorder %s33, 1
      %p76 = por %p74, %p75
      %p77 = scmp.ne.s32.totalorder %s69, %s72
      %p78 = scmp.eq.s32.totalorder %s33, 0
      %p79 = por %p77, %p78
      %p80 = scmp.ne.s32.totalorder %s69, %s72
      %p81 = scmp.eq.s32.totalorder %s38, 1
      %p82 = por %p80, %p81
      %p83 = scmp.ne.s32.totalorder %s72, %s73
      %p84 = scmp.eq.s32.totalorder %s38, 0
      %p85 = por %p83, %p84
      %p86 = scmp.ne.s32.totalorder %s72, %s73
      %p87 = scmp.eq.s32.totalorder %s39, 1
      %p88 = por %p86, %p87
      %p90 = scmp.ne.s32.totalorder %s73, %s89
      %p91 = scmp.eq.s32.totalorder %s39, 0
      %p92 = por %p90, %p91
      %s94 = sadd.s32 %s93, 1
      %p97 = scmp.eq.s32.totalorder %s33, 1
      %p98 = scmp.ne.s32.totalorder %s93, %s95
      %p99 = scmp.eq.s32.totalorder %s33, 0
      %p100 = por %p98, %p99
      %p101 = scmp.ne.s32.totalorder %s93, %s95
      %p102 = scmp.eq.s32.totalorder %s38, 1
      %p103 = por %p101, %p102
      %p104 = scmp.ne.s32.totalorder %s95, %s96
      %p105 = scmp.eq.s32.totalorder %s38, 0
      %p106 = por %p104, %p105
      %p107 = scmp.ne.s32.totalorder %s95, %s96
      %p108 = scmp.eq.s32.totalorder %s39, 1
      %p109 = por %p107, %p108
      %p111 = scmp.ne.s32.totalorder %s96, %s110
      %p112 = scmp.eq.s32.totalorder %s39, 0
      %p113 = por %p111, %p112
      %s115 = sadd.s32 %s114, 1
      %p118 = scmp.eq.s32.totalorder %s33, 1
      %p119 = scmp.ne.s32.totalorder %s114, %s116
      %p120 = scmp.eq.s32.totalorder %s33, 0
      %p121 = por %p119, %p120
      %p122 = scmp.ne.s32.totalorder %s114, %s116
      %p123 = scmp.eq.s32.totalorder %s38, 1
      %p124 = por %p122, %p123
      %p125 = scmp.ne.s32.totalorder %s116, %s117
      %p126 = scmp.eq.s32.totalorder %s38, 0
      %p127 = por %p125, %p126
      %p128 = scmp.ne.s32.totalorder %s116, %s117
      %p129 = scmp.eq.s32.totalorder %s39, 1
      %p130 = por %p128, %p129
      %p132 = scmp.ne.s32.totalorder %s117, %s131
      %p133 = scmp.eq.s32.totalorder %s39, 0
      %p134 = por %p132, %p133
      %s136 = sadd.s32 %s135, 1
      %p139 = scmp.eq.s32.totalorder %s33, 1
      %p140 = scmp.ne.s32.totalorder %s135, %s137
      %p141 = scmp.eq.s32.totalorder %s33, 0
      %p142 = por %p140, %p141
      %p143 = scmp.ne.s32.totalorder %s135, %s137
      %p144 = scmp.eq.s32.totalorder %s38, 1
      %p145 = por %p143, %p144
      %p146 = scmp.ne.s32.totalorder %s137, %s138
      %p147 = scmp.eq.s32.totalorder %s38, 0
      %p148 = por %p146, %p147
      %p149 = scmp.ne.s32.totalorder %s137, %s138
      %p150 = scmp.eq.s32.totalorder %s39, 1
      %p151 = por %p149, %p150
      %p153 = scmp.ne.s32.totalorder %s138, %s152
      %p154 = scmp.eq.s32.totalorder %s39, 0
      %p155 = por %p153, %p154
      %s157 = sadd.s32 %s156, 1
      %p160 = scmp.eq.s32.totalorder %s33, 1
      %p161 = scmp.ne.s32.totalorder %s156, %s158
      %p162 = scmp.eq.s32.totalorder %s33, 0
      %p163 = por %p161, %p162
      %p164 = scmp.ne.s32.totalorder %s156, %s158
      %p165 = scmp.eq.s32.totalorder %s38, 1
      %p166 = por %p164, %p165
      %p167 = scmp.ne.s32.totalorder %s158, %s159
      %p168 = scmp.eq.s32.totalorder %s38, 0
      %p169 = por %p167, %p168
      %p170 = scmp.ne.s32.totalorder %s158, %s159
      %p171 = scmp.eq.s32.totalorder %s39, 1
      %p172 = por %p170, %p171
      %p174 = scmp.ne.s32.totalorder %s159, %s173
      %p175 = scmp.eq.s32.totalorder %s39, 0
      %p176 = por %p174, %p175
      %s178 = sadd.s32 %s177, 1
      %p181 = scmp.eq.s32.totalorder %s33, 1
      %p182 = scmp.ne.s32.totalorder %s177, %s179
      %p183 = scmp.eq.s32.totalorder %s33, 0
      %p184 = por %p182, %p183
      %p185 = scmp.ne.s32.totalorder %s177, %s179
      %p186 = scmp.eq.s32.totalorder %s38, 1
      %p187 = por %p185, %p186
      %p188 = scmp.ne.s32.totalorder %s179, %s180
      %p189 = scmp.eq.s32.totalorder %s38, 0
      %p190 = por %p188, %p189
      %p191 = scmp.ne.s32.totalorder %s179, %s180
      %p192 = scmp.eq.s32.totalorder %s39, 1
      %p193 = por %p191, %p192
      %p195 = scmp.ne.s32.totalorder %s180, %s194
      %p196 = scmp.eq.s32.totalorder %s39, 0
      %p197 = por %p195, %p196
      %s199 = sadd.s32 %s198, 1
      %p202 = scmp.eq.s32.totalorder %s33, 1
      %p203 = scmp.ne.s32.totalorder %s198, %s200
      %p204 = scmp.eq.s32.totalorder %s33, 0
      %p205 = por %p203, %p204
      %p206 = scmp.ne.s32.totalorder %s198, %s200
      %p207 = scmp.eq.s32.totalorder %s38, 1
      %p208 = por %p206, %p207
      %p209 = scmp.ne.s32.totalorder %s200, %s201
      %p210 = scmp.eq.s32.totalorder %s38, 0
      %p211 = por %p209, %p210
      %p212 = scmp.ne.s32.totalorder %s200, %s201
      %p213 = scmp.eq.s32.totalorder %s39, 1
      %p214 = por %p212, %p213
      %p216 = scmp.ne.s32.totalorder %s201, %s215
      %p217 = scmp.eq.s32.totalorder %s39, 0
      %p218 = por %p216, %p217
      %s220 = sadd.s32 %s219, 1
      %p223 = scmp.eq.s32.totalorder %s33, 1
      %p224 = scmp.ne.s32.totalorder %s219, %s221
      %p225 = scmp.eq.s32.totalorder %s33, 0
      %p226 = por %p224, %p225
      %p227 = scmp.ne.s32.totalorder %s219, %s221
      %p228 = scmp.eq.s32.totalorder %s38, 1
      %p229 = por %p227, %p228
      %p230 = scmp.ne.s32.totalorder %s221, %s222
      %p231 = scmp.eq.s32.totalorder %s38, 0
      %p232 = por %p230, %p231
      %p233 = scmp.ne.s32.totalorder %s221, %s222
      %p234 = scmp.eq.s32.totalorder %s39, 1
      %p235 = por %p233, %p234
      %p237 = scmp.ne.s32.totalorder %s222, %s236
      %p238 = scmp.eq.s32.totalorder %s39, 0
      %p239 = por %p237, %p238
      %s241 = sadd.s32 %s240, 1
      %p244 = scmp.eq.s32.totalorder %s33, 1
      %p245 = scmp.ne.s32.totalorder %s240, %s242
      %p246 = scmp.eq.s32.totalorder %s33, 0
      %p247 = por %p245, %p246
      %p248 = scmp.ne.s32.totalorder %s240, %s242
      %p249 = scmp.eq.s32.totalorder %s38, 1
      %p250 = por %p248, %p249
      %p251 = scmp.ne.s32.totalorder %s242, %s243
      %p252 = scmp.eq.s32.totalorder %s38, 0
      %p253 = por %p251, %p252
      %p254 = scmp.ne.s32.totalorder %s242, %s243
      %p255 = scmp.eq.s32.totalorder %s39, 1
      %p256 = por %p254, %p255
      %p258 = scmp.ne.s32.totalorder %s243, %s257
      %p259 = scmp.eq.s32.totalorder %s39, 0
      %p260 = por %p258, %p259
      %s261 = ssub.s32 %s33, %s40
      %p262 = scmp.eq.s32.totalorder %s261, 0
      %s264 = sadd.s32 %s263, 1
      %s265 = scalar_select %p262, %s263, %s264
      %p268 = pneg %p262
      %p269 = scmp.eq.s32.totalorder %s33, 1
      %p270 = por %p268, %p269
      %p271 = scmp.ne.s32.totalorder %s263, %s266
      %p272 = scmp.eq.s32.totalorder %s33, 0
      %p273 = por %p271, %p272
      %p274 = scmp.ne.s32.totalorder %s263, %s266
      %p275 = scmp.eq.s32.totalorder %s38, 1
      %p276 = por %p274, %p275
      %p277 = scmp.ne.s32.totalorder %s266, %s267
      %p278 = scmp.eq.s32.totalorder %s38, 0
      %p279 = por %p277, %p278
      %p280 = scmp.ne.s32.totalorder %s266, %s267
      %p281 = scmp.eq.s32.totalorder %s39, 1
      %p282 = por %p280, %p281
      %p284 = scmp.ne.s32.totalorder %s267, %s283
      %p285 = scmp.eq.s32.totalorder %s39, 0
      %p286 = por %p284, %p285
      %s287 = ssub.s32 %s33, %s40
      %p288 = scmp.eq.s32.totalorder %s287, 0
      %s290 = sadd.s32 %s289, 1
      %s291 = scalar_select %p288, %s289, %s290
      %p294 = pneg %p288
      %p295 = scmp.eq.s32.totalorder %s33, 1
      %p296 = por %p294, %p295
      %p297 = scmp.ne.s32.totalorder %s289, %s292
      %p298 = scmp.eq.s32.totalorder %s33, 0
      %p299 = por %p297, %p298
      %p300 = scmp.ne.s32.totalorder %s289, %s292
      %p301 = scmp.eq.s32.totalorder %s38, 1
      %p302 = por %p300, %p301
      %p303 = scmp.ne.s32.totalorder %s292, %s293
      %p304 = scmp.eq.s32.totalorder %s38, 0
      %p305 = por %p303, %p304
      %p306 = scmp.ne.s32.totalorder %s292, %s293
      %p307 = scmp.eq.s32.totalorder %s39, 1
      %p308 = por %p306, %p307
      %p310 = scmp.ne.s32.totalorder %s293, %s309
      %p311 = scmp.eq.s32.totalorder %s39, 0
      %p312 = por %p310, %p311
      %s313 = ssub.s32 %s33, %s40
      %p314 = scmp.eq.s32.totalorder %s313, 0
      %s316 = sadd.s32 %s315, 1
      %s317 = scalar_select %p314, %s315, %s316
      %p320 = pneg %p314
      %p321 = scmp.eq.s32.totalorder %s33, 1
      %p322 = por %p320, %p321
      %p323 = scmp.ne.s32.totalorder %s315, %s318
      %p324 = scmp.eq.s32.totalorder %s33, 0
      %p325 = por %p323, %p324
      %p326 = scmp.ne.s32.totalorder %s315, %s318
      %p327 = scmp.eq.s32.totalorder %s38, 1
      %p328 = por %p326, %p327
      %p329 = scmp.ne.s32.totalorder %s318, %s319
      %p330 = scmp.eq.s32.totalorder %s38, 0
      %p331 = por %p329, %p330
      %p332 = scmp.ne.s32.totalorder %s318, %s319
      %p333 = scmp.eq.s32.totalorder %s39, 1
      %p334 = por %p332, %p333
      %p336 = scmp.ne.s32.totalorder %s319, %s335
      %p337 = scmp.eq.s32.totalorder %s39, 0
      %p338 = por %p336, %p337
      %s339 = ssub.s32 %s33, %s40
      %p340 = scmp.eq.s32.totalorder %s339, 0
      %s342 = sadd.s32 %s341, 1
      %s343 = scalar_select %p340, %s341, %s342
      %p346 = pneg %p340
      %p347 = scmp.eq.s32.totalorder %s33, 1
      %p348 = por %p346, %p347
      %p349 = scmp.ne.s32.totalorder %s341, %s344
      %p350 = scmp.eq.s32.totalorder %s33, 0
      %p351 = por %p349, %p350
      %p352 = scmp.ne.s32.totalorder %s341, %s344
      %p353 = scmp.eq.s32.totalorder %s38, 1
      %p354 = por %p352, %p353
      %p355 = scmp.ne.s32.totalorder %s344, %s345
      %p356 = scmp.eq.s32.totalorder %s38, 0
      %p357 = por %p355, %p356
      %p358 = scmp.ne.s32.totalorder %s344, %s345
      %p359 = scmp.eq.s32.totalorder %s39, 1
      %p360 = por %p358, %p359
      %p362 = scmp.ne.s32.totalorder %s345, %s361
      %p363 = scmp.eq.s32.totalorder %s39, 0
      %p364 = por %p362, %p363
      %p365 = scmp.le.s32.totalorder 1, %s33
      %p366 = scmp.lt.s32.totalorder %s33, 3
      %p367 = pnand %p365, %p366
      %p368 = pneg %p367
      // Predicated region
      $region9: #{tpu_custom_call.1} parent=5 // pred_check
        _
      $region10: #{tpu_custom_call.1} parent=5 // pred_check_branch
        %370 = sbr.rel (%p367) target = $region12
      $region11: #{tpu_custom_call.1} parent=5 // pred_region
        %s371 = ssub.s32 %s33, 1
        // Predicated region
        $region13: #{tpu_custom_call.1} parent=11 // pred_check
          %p372 = pneg %p106
        $region14: #{tpu_custom_call.1} parent=11 // pred_check_branch
          %374 = sbr.rel (%p372) target = $region16
        $region15: #{tpu_custom_call.1} parent=11 // pred_region
          %s376 = ssub.s32 512, 512
          %377 = vsyncadd [#allocation6], %s376
          %s378 = sshll.u32 [#allocation5], 4
          %s379 = int_to_ptr.vmem [resolvable:$true] %s378
          %384 = dma.hbm_to_vmem [thread:$0]  %s2, 512, %s379, [#allocation6], 128, 128, 8
        $region16: #{tpu_custom_call.1} parent=11 // pred_fallthru
          _
        // Predicated region
        $region17: #{tpu_custom_call.1} parent=11 // pred_check
          %p385 = pneg %p127
        $region18: #{tpu_custom_call.1} parent=11 // pred_check_branch
          %387 = sbr.rel (%p385) target = $region20
        $region19: #{tpu_custom_call.1} parent=11 // pred_region
          %s389 = ssub.s32 16, 16
          %390 = vsyncadd [#allocation6], %s389
          %s392 = sshll.u32 [#allocation7], 4
          %s393 = int_to_ptr.vmem [resolvable:$true] %s392
          %395 = dma.hbm_to_vmem [thread:$0]  %s3, 16, %s393, [#allocation6]
        $region20: #{tpu_custom_call.1} parent=11 // pred_fallthru
          _
        // Predicated region
        $region21: #{tpu_custom_call.1} parent=11 // pred_check
          %p396 = pneg %p148
        $region22: #{tpu_custom_call.1} parent=11 // pred_check_branch
          %398 = sbr.rel (%p396) target = $region24
        $region23: #{tpu_custom_call.1} parent=11 // pred_region
          %s400 = ssub.s32 512, 512
          %401 = vsyncadd [#allocation9], %s400
          %s402 = sshll.u32 [#allocation8], 4
          %s403 = int_to_ptr.vmem [resolvable:$true] %s402
          %408 = dma.hbm_to_vmem [thread:$0]  %s4, 512, %s403, [#allocation9], 128, 128, 8
        $region24: #{tpu_custom_call.1} parent=11 // pred_fallthru
          _
        // Predicated region
        $region25: #{tpu_custom_call.1} parent=11 // pred_check
          %p409 = pneg %p169
        $region26: #{tpu_custom_call.1} parent=11 // pred_check_branch
          %411 = sbr.rel (%p409) target = $region28
        $region27: #{tpu_custom_call.1} parent=11 // pred_region
          %s413 = ssub.s32 16, 16
          %414 = vsyncadd [#allocation9], %s413
          %s416 = sshll.u32 [#allocation10], 4
          %s417 = int_to_ptr.vmem [resolvable:$true] %s416
          %419 = dma.hbm_to_vmem [thread:$0]  %s5, 16, %s417, [#allocation9]
        $region28: #{tpu_custom_call.1} parent=11 // pred_fallthru
          _
        // Predicated region
        $region29: #{tpu_custom_call.1} parent=11 // pred_check
          %p420 = pneg %p190
        $region30: #{tpu_custom_call.1} parent=11 // pred_check_branch
          %422 = sbr.rel (%p420) target = $region32
        $region31: #{tpu_custom_call.1} parent=11 // pred_region
          %s424 = ssub.s32 512, 512
          %425 = vsyncadd [#allocation12], %s424
          %s426 = sshll.u32 [#allocation11], 4
          %s427 = int_to_ptr.vmem [resolvable:$true] %s426
          %432 = dma.hbm_to_vmem [thread:$0]  %s6, 512, %s427, [#allocation12], 128, 128, 8
        $region32: #{tpu_custom_call.1} parent=11 // pred_fallthru
          _
        // Predicated region
        $region33: #{tpu_custom_call.1} parent=11 // pred_check
          %p433 = pneg %p211
        $region34: #{tpu_custom_call.1} parent=11 // pred_check_branch
          %435 = sbr.rel (%p433) target = $region36
        $region35: #{tpu_custom_call.1} parent=11 // pred_region
          %s437 = ssub.s32 16, 16
          %438 = vsyncadd [#allocation12], %s437
          %s440 = sshll.u32 [#allocation13], 4
          %s441 = int_to_ptr.vmem [resolvable:$true] %s440
          %443 = dma.hbm_to_vmem [thread:$0]  %s7, 16, %s441, [#allocation12]
        $region36: #{tpu_custom_call.1} parent=11 // pred_fallthru
          _
        // Predicated region
        $region37: #{tpu_custom_call.1} parent=11 // pred_check
          %p444 = pneg %p232
        $region38: #{tpu_custom_call.1} parent=11 // pred_check_branch
          %446 = sbr.rel (%p444) target = $region40
        $region39: #{tpu_custom_call.1} parent=11 // pred_region
          %s448 = ssub.s32 16, 16
          %449 = vsyncadd [#allocation15], %s448
          %s451 = sshll.u32 [#allocation14], 4
          %s452 = int_to_ptr.vmem [resolvable:$true] %s451
          %454 = dma.hbm_to_vmem [thread:$0]  %s8, 16, %s452, [#allocation15]
        $region40: #{tpu_custom_call.1} parent=11 // pred_fallthru
          _
        // Predicated region
        $region41: #{tpu_custom_call.1} parent=11 // pred_check
          %p455 = pneg %p253
        $region42: #{tpu_custom_call.1} parent=11 // pred_check_branch
          %457 = sbr.rel (%p455) target = $region44
        $region43: #{tpu_custom_call.1} parent=11 // pred_region
          %s459 = ssub.s32 16, 16
          %460 = vsyncadd [#allocation15], %s459
          %s462 = sshll.u32 [#allocation16], 4
          %s463 = int_to_ptr.vmem [resolvable:$true] %s462
          %465 = dma.hbm_to_vmem [thread:$0]  %s9, 16, %s463, [#allocation15]
        $region44: #{tpu_custom_call.1} parent=11 // pred_fallthru
          _
      $region12: #{tpu_custom_call.1} parent=5 // pred_fallthru
        _
      %p466 = scmp.lt.s32.totalorder %s33, 2
      // Predicated region
      $region45: #{tpu_custom_call.1} parent=5 // pred_check
        %p467 = pneg %p466
      $region46: #{tpu_custom_call.1} parent=5 // pred_check_branch
        %469 = sbr.rel (%p467) target = $region48
      $region47: #{tpu_custom_call.1} parent=5 // pred_region
        // Predicated region
        $region49: #{tpu_custom_call.1} parent=47 // pred_check
          %p470 = pneg %p53
        $region50: #{tpu_custom_call.1} parent=47 // pred_check_branch
          %472 = sbr.rel (%p470) target = $region52
        $region51: #{tpu_custom_call.1} parent=47 // pred_region
          %p473 = scmp.lt.s32.totalorder %s33, 1
          %s474 = scalar_select %p473, %s33, 1
          %s475 = smul.addr %s474, 8
          %s476 = scalar_lea.vmem %s0, %s475
        $region52: #{tpu_custom_call.1} parent=47 // pred_fallthru
          _
        // Predicated region
        $region53: #{tpu_custom_call.1} parent=47 // pred_check
          %p477 = pneg %p79
        $region54: #{tpu_custom_call.1} parent=47 // pred_check_branch
          %479 = sbr.rel (%p477) target = $region56
        $region55: #{tpu_custom_call.1} parent=47 // pred_region
          %s480 = sand.u32 %s69, 1
          %s481 = scalar_lea.sflag [#allocation3], %s480
          %s482 = sand.u32 %s69, 1
          %s483 = smul.addr %s482, 8
          %s484 = scalar_lea.vmem [#allocation2], %s483
          %s486 = ssub.s32 128, 128
          %487 = vsyncadd %s481, %s486
          %s488 = smul.addr %s33, 128
          %s489 = scalar_lea.hbm %s1, %s488
          %s491 = sshll.u32 %s484, 4
          %s492 = int_to_ptr.vmem [resolvable:$true] %s491
          %494 = dma.hbm_to_vmem [thread:$0]  %s489, 128, %s492, %s481
        $region56: #{tpu_custom_call.1} parent=47 // pred_fallthru
          _
        // Predicated region
        $region57: #{tpu_custom_call.1} parent=47 // pred_check
          %p495 = pneg %p273
        $region58: #{tpu_custom_call.1} parent=47 // pred_check_branch
          %497 = sbr.rel (%p495) target = $region60
        $region59: #{tpu_custom_call.1} parent=47 // pred_region
          %p498 = scmp.lt.s32.totalorder %s33, 1
          %s499 = scalar_select %p498, %s33, 1
          %s500 = smul.addr %s499, 8
          %s501 = scalar_lea.vmem %s10, %s500
        $region60: #{tpu_custom_call.1} parent=47 // pred_fallthru
          _
        // Predicated region
        $region61: #{tpu_custom_call.1} parent=47 // pred_check
          %p502 = pneg %p299
        $region62: #{tpu_custom_call.1} parent=47 // pred_check_branch
          %504 = sbr.rel (%p502) target = $region64
        $region63: #{tpu_custom_call.1} parent=47 // pred_region
          %p505 = scmp.lt.s32.totalorder %s33, 1
          %s506 = scalar_select %p505, %s33, 1
          %s507 = smul.addr %s506, 8
          %s508 = scalar_lea.vmem %s11, %s507
        $region64: #{tpu_custom_call.1} parent=47 // pred_fallthru
          _
      $region48: #{tpu_custom_call.1} parent=5 // pred_fallthru
        _
      %p509 = scmp.le.s32.totalorder 1, %s33
      %p510 = scmp.lt.s32.totalorder %s33, 3
      %p511 = pnand %p509, %p510
      %p512 = pneg %p511
      // Predicated region
      $region65: #{tpu_custom_call.1} parent=5 // pred_check
        _
      $region66: #{tpu_custom_call.1} parent=5 // pred_check_branch
        %514 = sbr.rel (%p511) target = $region68
      $region67: #{tpu_custom_call.1} parent=5 // pred_region
        %s515 = ssub.s32 %s33, 1
        %s516 = sand.u32 %s72, 1
        %s517 = scalar_lea.sflag [#allocation3], %s516
        %s518 = sand.u32 %s72, 1
        %s519 = smul.addr %s518, 8
        %s520 = scalar_lea.vmem [#allocation2], %s519
        // Predicated region
        $region69: #{tpu_custom_call.1} parent=67 // pred_check
          %p521 = pneg %p85
        $region70: #{tpu_custom_call.1} parent=67 // pred_check_branch
          %523 = sbr.rel (%p521) target = $region72
        $region71: #{tpu_custom_call.1} parent=67 // pred_region
          %524 = dma.done %s517, 128
        $region72: #{tpu_custom_call.1} parent=67 // pred_fallthru
          _
        // Predicated region
        $region73: #{tpu_custom_call.1} parent=67 // pred_check
          %p525 = pneg %p106
        $region74: #{tpu_custom_call.1} parent=67 // pred_check_branch
          %527 = sbr.rel (%p525) target = $region76
        $region75: #{tpu_custom_call.1} parent=67 // pred_region
          %528 = dma.done [#allocation6], 512
        $region76: #{tpu_custom_call.1} parent=67 // pred_fallthru
          _
        // Predicated region
        $region77: #{tpu_custom_call.1} parent=67 // pred_check
          %p529 = pneg %p127
        $region78: #{tpu_custom_call.1} parent=67 // pred_check_branch
          %531 = sbr.rel (%p529) target = $region80
        $region79: #{tpu_custom_call.1} parent=67 // pred_region
          %532 = dma.done [#allocation6], 16
        $region80: #{tpu_custom_call.1} parent=67 // pred_fallthru
          _
        // Predicated region
        $region81: #{tpu_custom_call.1} parent=67 // pred_check
          %p533 = pneg %p148
        $region82: #{tpu_custom_call.1} parent=67 // pred_check_branch
          %535 = sbr.rel (%p533) target = $region84
        $region83: #{tpu_custom_call.1} parent=67 // pred_region
          %536 = dma.done [#allocation9], 512
        $region84: #{tpu_custom_call.1} parent=67 // pred_fallthru
          _
        // Predicated region
        $region85: #{tpu_custom_call.1} parent=67 // pred_check
          %p537 = pneg %p169
        $region86: #{tpu_custom_call.1} parent=67 // pred_check_branch
          %539 = sbr.rel (%p537) target = $region88
        $region87: #{tpu_custom_call.1} parent=67 // pred_region
          %540 = dma.done [#allocation9], 16
        $region88: #{tpu_custom_call.1} parent=67 // pred_fallthru
          _
        // Predicated region
        $region89: #{tpu_custom_call.1} parent=67 // pred_check
          %p541 = pneg %p190
        $region90: #{tpu_custom_call.1} parent=67 // pred_check_branch
          %543 = sbr.rel (%p541) target = $region92
        $region91: #{tpu_custom_call.1} parent=67 // pred_region
          %544 = dma.done [#allocation12], 512
        $region92: #{tpu_custom_call.1} parent=67 // pred_fallthru
          _
        // Predicated region
        $region93: #{tpu_custom_call.1} parent=67 // pred_check
          %p545 = pneg %p211
        $region94: #{tpu_custom_call.1} parent=67 // pred_check_branch
          %547 = sbr.rel (%p545) target = $region96
        $region95: #{tpu_custom_call.1} parent=67 // pred_region
          %548 = dma.done [#allocation12], 16
        $region96: #{tpu_custom_call.1} parent=67 // pred_fallthru
          _
        // Predicated region
        $region97: #{tpu_custom_call.1} parent=67 // pred_check
          %p549 = pneg %p232
        $region98: #{tpu_custom_call.1} parent=67 // pred_check_branch
          %551 = sbr.rel (%p549) target = $region100
        $region99: #{tpu_custom_call.1} parent=67 // pred_region
          %552 = dma.done [#allocation15], 16
        $region100: #{tpu_custom_call.1} parent=67 // pred_fallthru
          _
        // Predicated region
        $region101: #{tpu_custom_call.1} parent=67 // pred_check
          %p553 = pneg %p253
        $region102: #{tpu_custom_call.1} parent=67 // pred_check_branch
          %555 = sbr.rel (%p553) target = $region104
        $region103: #{tpu_custom_call.1} parent=67 // pred_region
          %556 = dma.done [#allocation15], 16
        $region104: #{tpu_custom_call.1} parent=67 // pred_fallthru
          _
        %p557 = scmp.lt.s32.totalorder %s38, 1
        %s558 = scalar_select %p557, %s38, 1
        %s559 = smul.addr %s558, 8
        %s560 = scalar_lea.vmem %s0, %s559
        %p561 = pneg %p59
        %p562 = pneg %p56
        %s563 = sand.u32 %s72, 1
        %s564 = scalar_lea.sflag [#allocation3], %s563
        %s565 = sand.u32 %s72, 1
        %s566 = smul.addr %s565, 8
        %s567 = scalar_lea.vmem [#allocation2], %s566
        %p568 = pneg %p85
        %p569 = pneg %p82
        %p570 = pneg %p106
        %p571 = pneg %p103
        %p572 = pneg %p127
        %p573 = pneg %p124
        %p574 = pneg %p148
        %p575 = pneg %p145
        %p576 = pneg %p169
        %p577 = pneg %p166
        %p578 = pneg %p190
        %p579 = pneg %p187
        %p580 = pneg %p211
        %p581 = pneg %p208
        %p582 = pneg %p232
        %p583 = pneg %p229
        %p584 = pneg %p253
        %p585 = pneg %p250
        %p586 = scmp.lt.s32.totalorder %s38, 1
        %s587 = scalar_select %p586, %s38, 1
        %s588 = smul.addr %s587, 8
        %s589 = scalar_lea.vmem %s10, %s588
        %p590 = pneg %p279
        %p591 = pneg %p276
        %p592 = scmp.lt.s32.totalorder %s38, 1
        %s593 = scalar_select %p592, %s38, 1
        %s594 = smul.addr %s593, 8
        %s595 = scalar_lea.vmem %s11, %s594
        %p596 = pneg %p305
        %p597 = pneg %p302
        %p598 = pneg %p331
        %p599 = pneg %p328
        %s600 = sand.u32 %s318, 1
        %s601 = scalar_lea.sflag [#allocation4], %s600
        %s602 = sand.u32 %s318, 1
        %s603 = smul.addr %s602, 8
        %s604 = scalar_lea.vmem [#allocation17], %s603
        %p605 = pneg %p357
        %p606 = pneg %p354
        %s607 = sand.u32 %s344, 1
        %s608 = scalar_lea.sflag [#allocation19], %s607
        %s609 = sand.u32 %s344, 1
        %s610 = smul.addr %s609, 32
        %s611 = scalar_lea.vmem [#allocation18], %s610
        %p612 = scmp.lt.s32.totalorder %s38, 1
        %s613 = scalar_select %p612, %s38, 1
        %s614 = smul.addr %s613, 8
        %s615 = scalar_lea.vmem %s0, %s614
        %p616 = scmp.lt.s32.totalorder %s38, 1
        %s617 = scalar_select %p616, %s38, 1
        %s618 = smul.addr %s617, 8
        %s619 = scalar_lea.vmem %s10, %s618
        %p620 = scmp.lt.s32.totalorder %s38, 1
        %s621 = scalar_select %p620, %s38, 1
        %s622 = smul.addr %s621, 8
        %s623 = scalar_lea.vmem %s11, %s622
        %v624 = vld [vmem:[%s615] sm:$0xff]
        %v625 = vld [vmem:[%s520] sm:$0xff]
        %v626 = vld [vmem:[%s619] sm:$0xff]
        %v627 = vld [vmem:[#allocation5] sm:$0xff]
        %v628 = vld [vmem:[#allocation5 + $0x8] sm:$0xff]
        %v629 = vld [vmem:[#allocation5 + $0x10] sm:$0xff]
        %v630 = vld [vmem:[#allocation5 + $0x18] sm:$0xff]
        %v631 = vld [vmem:[#allocation7] sm:$0x1]
        %v633 = vlaneseq
        %v634 = vshrl.u32 %v633, 7
        %v635 = vsub.s32 0, %v634
        %v636 = vrot.slane %v631, %v635
        %vm638 = vcmask 261120
        %v640 = vsel %vm638, %v624, 0
        %642 = vmatprep.subr.mxu0 0.0
        %643 = vmatpush1.msra.mxu0 0.0
        %644 = vmatprep.subr.mxu0 0.0
        %645 = vmatpush1.msra.mxu0 0.0
        %646 = vmatprep.subr.mxu0 0.0
        %647 = vmatpush1.msra.mxu0 0.0
        %648 = vmatprep.subr.mxu0 0.0
        %649 = vmatpush1.msra.mxu0 0.0
        %650 = vmatprep.subr.mxu0 0.0
        %651 = vmatpush1.msra.mxu0 0.0
        %652 = vmatprep.subr.mxu0 0.0
        %653 = vmatpush1.msra.mxu0 0.0
        %654 = vmatprep.subr.mxu0 0.0
        %655 = vmatpush1.msra.mxu0 0.0
        %656 = vmatprep.subr.mxu0 0.0
        %657 = vmatpush1.msra.mxu0 0.0
        %658 = vmatprep.subr.mxu0 0.0
        %659 = vmatpush1.msra.mxu0 0.0
        %660 = vmatprep.subr.mxu0 0.0
        %661 = vmatpush1.msra.mxu0 0.0
        %662 = vmatprep.subr.mxu0 0.0
        %663 = vmatpush1.msra.mxu0 0.0
        %664 = vmatprep.subr.mxu0 0.0
        %665 = vmatpush1.msra.mxu0 0.0
        %666 = vmatprep.subr.mxu0 0.0
        %667 = vmatpush1.msra.mxu0 %v630
        %668 = vmatprep.subr.mxu0 0.0
        %669 = vmatpush1.msra.mxu0 %v629
        %670 = vmatprep.subr.mxu0 0.0
        %671 = vmatpush1.msra.mxu0 %v628
        %672 = vmatprep.subr.mxu0 0.0
        %673 = vmatpush1.msra.mxu0 %v627
        %674 = vmatprep.subr.mxu0 0.0
        %675 = vmatpush2.msra.mxu0 0.0
        %676 = vmatprep.subr.mxu0 0.0
        %677 = vmatpush2.msra.mxu0 0.0
        %678 = vmatprep.subr.mxu0 0.0
        %679 = vmatpush2.msra.mxu0 0.0
        %680 = vmatprep.subr.mxu0 0.0
        %681 = vmatpush2.msra.mxu0 0.0
        %682 = vmatprep.subr.mxu0 0.0
        %683 = vmatpush2.msra.mxu0 0.0
        %684 = vmatprep.subr.mxu0 0.0
        %685 = vmatpush2.msra.mxu0 0.0
        %686 = vmatprep.subr.mxu0 0.0
        %687 = vmatpush2.msra.mxu0 0.0
        %688 = vmatprep.subr.mxu0 0.0
        %689 = vmatpush2.msra.mxu0 0.0
        %690 = vmatprep.subr.mxu0 0.0
        %691 = vmatpush2.msra.mxu0 0.0
        %692 = vmatprep.subr.mxu0 0.0
        %693 = vmatpush2.msra.mxu0 0.0
        %694 = vmatprep.subr.mxu0 0.0
        %695 = vmatpush2.msra.mxu0 0.0
        %696 = vmatprep.subr.mxu0 0.0
        %697 = vmatpush2.msra.mxu0 0.0
        %698 = vmatprep.subr.mxu0 0.0
        %699 = vmatpush2.msra.mxu0 0.0
        %700 = vmatprep.subr.mxu0 0.0
        %701 = vmatpush2.msra.mxu0 0.0
        %702 = vmatprep.subr.mxu0 0.0
        %703 = vmatpush2.msra.mxu0 0.0
        %704 = vmatprep.subr.mxu0 0.0
        %705 = vmatpush2.msra.mxu0 0.0
        %706 = vmatprep.mubr.f32.mxu0 0.0
        %707 = vmatmul.mubr.f32.gmra.mxu0 %v640
        %v708 = vpop.f32.mrf.mxu0
        %v709 = vadd.f32 %v636, %v708
        %v710 = vpop.f32.mrf.mxu0
        %711 = vdwg.mxu0
        %v712 = vld [vmem:[#allocation8] sm:$0xff]
        %v713 = vld [vmem:[#allocation8 + $0x8] sm:$0xff]
        %v714 = vld [vmem:[#allocation8 + $0x10] sm:$0xff]
        %v715 = vld [vmem:[#allocation8 + $0x18] sm:$0xff]
        %v716 = vld [vmem:[#allocation10] sm:$0x1]
        %v718 = vlaneseq
        %v719 = vshrl.u32 %v718, 7
        %v720 = vsub.s32 0, %v719
        %v721 = vrot.slane %v716, %v720
        %v724 = vsel %vm638, %v625, 0
        %726 = vmatprep.subr.mxu0 0.0
        %727 = vmatpush1.msra.mxu0 0.0
        %728 = vmatprep.subr.mxu0 0.0
        %729 = vmatpush1.msra.mxu0 0.0
        %730 = vmatprep.subr.mxu0 0.0
        %731 = vmatpush1.msra.mxu0 0.0
        %732 = vmatprep.subr.mxu0 0.0
        %733 = vmatpush1.msra.mxu0 0.0
        %734 = vmatprep.subr.mxu0 0.0
        %735 = vmatpush1.msra.mxu0 0.0
        %736 = vmatprep.subr.mxu0 0.0
        %737 = vmatpush1.msra.mxu0 0.0
        %738 = vmatprep.subr.mxu0 0.0
        %739 = vmatpush1.msra.mxu0 0.0
        %740 = vmatprep.subr.mxu0 0.0
        %741 = vmatpush1.msra.mxu0 0.0
        %742 = vmatprep.subr.mxu0 0.0
        %743 = vmatpush1.msra.mxu0 0.0
        %744 = vmatprep.subr.mxu0 0.0
        %745 = vmatpush1.msra.mxu0 0.0
        %746 = vmatprep.subr.mxu0 0.0
        %747 = vmatpush1.msra.mxu0 0.0
        %748 = vmatprep.subr.mxu0 0.0
        %749 = vmatpush1.msra.mxu0 0.0
        %750 = vmatprep.subr.mxu0 0.0
        %751 = vmatpush1.msra.mxu0 %v715
        %752 = vmatprep.subr.mxu0 0.0
        %753 = vmatpush1.msra.mxu0 %v714
        %754 = vmatprep.subr.mxu0 0.0
        %755 = vmatpush1.msra.mxu0 %v713
        %756 = vmatprep.subr.mxu0 0.0
        %757 = vmatpush1.msra.mxu0 %v712
        %758 = vmatprep.subr.mxu0 0.0
        %759 = vmatpush2.msra.mxu0 0.0
        %760 = vmatprep.subr.mxu0 0.0
        %761 = vmatpush2.msra.mxu0 0.0
        %762 = vmatprep.subr.mxu0 0.0
        %763 = vmatpush2.msra.mxu0 0.0
        %764 = vmatprep.subr.mxu0 0.0
        %765 = vmatpush2.msra.mxu0 0.0
        %766 = vmatprep.subr.mxu0 0.0
        %767 = vmatpush2.msra.mxu0 0.0
        %768 = vmatprep.subr.mxu0 0.0
        %769 = vmatpush2.msra.mxu0 0.0
        %770 = vmatprep.subr.mxu0 0.0
        %771 = vmatpush2.msra.mxu0 0.0
        %772 = vmatprep.subr.mxu0 0.0
        %773 = vmatpush2.msra.mxu0 0.0
        %774 = vmatprep.subr.mxu0 0.0
        %775 = vmatpush2.msra.mxu0 0.0
        %776 = vmatprep.subr.mxu0 0.0
        %777 = vmatpush2.msra.mxu0 0.0
        %778 = vmatprep.subr.mxu0 0.0
        %779 = vmatpush2.msra.mxu0 0.0
        %780 = vmatprep.subr.mxu0 0.0
        %781 = vmatpush2.msra.mxu0 0.0
        %782 = vmatprep.subr.mxu0 0.0
        %783 = vmatpush2.msra.mxu0 0.0
        %784 = vmatprep.subr.mxu0 0.0
        %785 = vmatpush2.msra.mxu0 0.0
        %786 = vmatprep.subr.mxu0 0.0
        %787 = vmatpush2.msra.mxu0 0.0
        %788 = vmatprep.subr.mxu0 0.0
        %789 = vmatpush2.msra.mxu0 0.0
        %790 = vmatprep.mubr.f32.mxu0 0.0
        %791 = vmatmul.mubr.f32.gmra.mxu0 %v724
        %v792 = vpop.f32.mrf.mxu0
        %v793 = vadd.f32 %v721, %v792
        %v794 = vpop.f32.mrf.mxu0
        %795 = vdwg.mxu0
        %v796 = vld [vmem:[#allocation11] sm:$0xff]
        %v797 = vld [vmem:[#allocation11 + $0x8] sm:$0xff]
        %v798 = vld [vmem:[#allocation11 + $0x10] sm:$0xff]
        %v799 = vld [vmem:[#allocation11 + $0x18] sm:$0xff]
        %vm800 = vcmask 64512
        %v802 = vsel %vm800, %v709, 0
        %v805 = vsel %vm800, %v793, 0
        %807 = vmatprep.subr.mxu0 0.0
        %808 = vmatpush1.xpose.msra.mxu0 0.0
        %809 = vmatprep.subr.mxu0 0.0
        %810 = vmatpush1.xpose.msra.mxu0 0.0
        %811 = vmatprep.subr.mxu0 0.0
        %812 = vmatpush1.xpose.msra.mxu0 0.0
        %813 = vmatprep.subr.mxu0 0.0
        %814 = vmatpush1.xpose.msra.mxu0 0.0
        %815 = vmatprep.subr.mxu0 0.0
        %816 = vmatpush1.xpose.msra.mxu0 0.0
        %817 = vmatprep.subr.mxu0 0.0
        %818 = vmatpush1.xpose.msra.mxu0 0.0
        %819 = vmatprep.subr.mxu0 0.0
        %820 = vmatpush1.xpose.msra.mxu0 0.0
        %821 = vmatprep.subr.mxu0 0.0
        %822 = vmatpush1.xpose.msra.mxu0 0.0
        %823 = vmatprep.subr.mxu0 0.0
        %824 = vmatpush1.xpose.msra.mxu0 0.0
        %825 = vmatprep.subr.mxu0 0.0
        %826 = vmatpush1.xpose.msra.mxu0 0.0
        %827 = vmatprep.subr.mxu0 0.0
        %828 = vmatpush1.xpose.msra.mxu0 0.0
        %829 = vmatprep.subr.mxu0 0.0
        %830 = vmatpush1.xpose.msra.mxu0 0.0
        %831 = vmatprep.subr.mxu0 0.0
        %832 = vmatpush1.xpose.msra.mxu0 0.0
        %833 = vmatprep.subr.mxu0 0.0
        %834 = vmatpush1.xpose.msra.mxu0 0.0
        %835 = vmatprep.subr.mxu0 0.0
        %836 = vmatpush1.xpose.msra.mxu0 0.0
        %837 = vmatprep.subr.mxu0 0.0
        %838 = vmatpush1.xpose.msra.mxu0 %v805
        %839 = vmatprep.subr.mxu0 0.0
        %840 = vmatpush2.xpose.msra.mxu0 0.0
        %841 = vmatprep.subr.mxu0 0.0
        %842 = vmatpush2.xpose.msra.mxu0 0.0
        %843 = vmatprep.subr.mxu0 0.0
        %844 = vmatpush2.xpose.msra.mxu0 0.0
        %845 = vmatprep.subr.mxu0 0.0
        %846 = vmatpush2.xpose.msra.mxu0 0.0
        %847 = vmatprep.subr.mxu0 0.0
        %848 = vmatpush2.xpose.msra.mxu0 0.0
        %849 = vmatprep.subr.mxu0 0.0
        %850 = vmatpush2.xpose.msra.mxu0 0.0
        %851 = vmatprep.subr.mxu0 0.0
        %852 = vmatpush2.xpose.msra.mxu0 0.0
        %853 = vmatprep.subr.mxu0 0.0
        %854 = vmatpush2.xpose.msra.mxu0 0.0
        %855 = vmatprep.subr.mxu0 0.0
        %856 = vmatpush2.xpose.msra.mxu0 0.0
        %857 = vmatprep.subr.mxu0 0.0
        %858 = vmatpush2.xpose.msra.mxu0 0.0
        %859 = vmatprep.subr.mxu0 0.0
        %860 = vmatpush2.xpose.msra.mxu0 0.0
        %861 = vmatprep.subr.mxu0 0.0
        %862 = vmatpush2.xpose.msra.mxu0 0.0
        %863 = vmatprep.subr.mxu0 0.0
        %864 = vmatpush2.xpose.msra.mxu0 0.0
        %865 = vmatprep.subr.mxu0 0.0
        %866 = vmatpush2.xpose.msra.mxu0 0.0
        %867 = vmatprep.subr.mxu0 0.0
        %868 = vmatpush2.xpose.msra.mxu0 0.0
        %869 = vmatprep.subr.mxu0 0.0
        %870 = vmatpush2.xpose.msra.mxu0 0.0
        %871 = vmatprep.mubr.f32.mxu0 0.0
        %872 = vmatmul.mubr.f32.gmra.mxu0 %v802
        %v873 = vpop.f32.mrf.mxu0
        %v874 = vadd.f32 %v626, %v873
        %v875 = vpop.f32.mrf.mxu0
        %876 = vdwg.mxu0
        %v877 = vsel %vm800, %v874, -inf
        %878 = vmax.xlane.f32.xlu0 %v877
        %v879 = vpop.xlane.xlu0 %878
        %v880 = vsub.f32 %v874, %v879
        %v881 = vmul.f32 %v880, 1.442695
        %v882 = vpow.pop %v881
        %v883 = vsel %vm800, %v882, 0.0
        %884 = vadd.xlane.f32.xlu0 %v883
        %v885 = vpop.xlane.xlu0 %884
        %v886 = vrcp.pop %v885
        %v887 = vmul.f32 %v882, %v886
        %888 = vst.msk [vmem:[%s611] sm:$0xff] %vm800, %v887
        %889 = vrot.lane.b32.xlu0 %v793, 96
        %v890 = vpop.permute.xlu0 %889
        %v893 = vsel %vm800, %v887, 0
        %895 = vmatprep.subr.mxu0 0.0
        %896 = vmatpush1.msra.mxu0 0.0
        %897 = vmatprep.subr.mxu0 0.0
        %898 = vmatpush1.msra.mxu0 0.0
        %899 = vmatprep.subr.mxu0 0.0
        %900 = vmatpush1.msra.mxu0 0.0
        %901 = vmatprep.subr.mxu0 0.0
        %902 = vmatpush1.msra.mxu0 0.0
        %903 = vmatprep.subr.mxu0 0.0
        %904 = vmatpush1.msra.mxu0 0.0
        %905 = vmatprep.subr.mxu0 0.0
        %906 = vmatpush1.msra.mxu0 0.0
        %907 = vmatprep.subr.mxu0 0.0
        %908 = vmatpush1.msra.mxu0 0.0
        %909 = vmatprep.subr.mxu0 0.0
        %910 = vmatpush1.msra.mxu0 0.0
        %911 = vmatprep.subr.mxu0 0.0
        %912 = vmatpush1.msra.mxu0 0.0
        %913 = vmatprep.subr.mxu0 0.0
        %914 = vmatpush1.msra.mxu0 0.0
        %915 = vmatprep.subr.mxu0 0.0
        %916 = vmatpush1.msra.mxu0 0.0
        %917 = vmatprep.subr.mxu0 0.0
        %918 = vmatpush1.msra.mxu0 0.0
        %919 = vmatprep.subr.mxu0 0.0
        %920 = vmatpush1.msra.mxu0 0.0
        %921 = vmatprep.subr.mxu0 0.0
        %922 = vmatpush1.msra.mxu0 0.0
        %923 = vmatprep.subr.mxu0 0.0
        %924 = vmatpush1.msra.mxu0 0.0
        %925 = vmatprep.subr.mxu0 0.0
        %926 = vmatpush1.msra.mxu0 %v890
        %927 = vmatprep.subr.mxu0 0.0
        %928 = vmatpush2.msra.mxu0 0.0
        %929 = vmatprep.subr.mxu0 0.0
        %930 = vmatpush2.msra.mxu0 0.0
        %931 = vmatprep.subr.mxu0 0.0
        %932 = vmatpush2.msra.mxu0 0.0
        %933 = vmatprep.subr.mxu0 0.0
        %934 = vmatpush2.msra.mxu0 0.0
        %935 = vmatprep.subr.mxu0 0.0
        %936 = vmatpush2.msra.mxu0 0.0
        %937 = vmatprep.subr.mxu0 0.0
        %938 = vmatpush2.msra.mxu0 0.0
        %939 = vmatprep.subr.mxu0 0.0
        %940 = vmatpush2.msra.mxu0 0.0
        %941 = vmatprep.subr.mxu0 0.0
        %942 = vmatpush2.msra.mxu0 0.0
        %943 = vmatprep.subr.mxu0 0.0
        %944 = vmatpush2.msra.mxu0 0.0
        %945 = vmatprep.subr.mxu0 0.0
        %946 = vmatpush2.msra.mxu0 0.0
        %947 = vmatprep.subr.mxu0 0.0
        %948 = vmatpush2.msra.mxu0 0.0
        %949 = vmatprep.subr.mxu0 0.0
        %950 = vmatpush2.msra.mxu0 0.0
        %951 = vmatprep.subr.mxu0 0.0
        %952 = vmatpush2.msra.mxu0 0.0
        %953 = vmatprep.subr.mxu0 0.0
        %954 = vmatpush2.msra.mxu0 0.0
        %955 = vmatprep.subr.mxu0 0.0
        %956 = vmatpush2.msra.mxu0 0.0
        %957 = vmatprep.subr.mxu0 0.0
        %958 = vmatpush2.msra.mxu0 0.0
        %959 = vmatprep.mubr.f32.mxu0 0.0
        %960 = vmatmul.mubr.f32.gmra.mxu0 %v893
        %v961 = vpop.f32.mrf.mxu0
        %v962 = vadd.f32 0.0, %v961
        %v963 = vpop.f32.mrf.mxu0
        %964 = vdwg.mxu0
        %965 = vrot.lane.b32.xlu0 %v709, 120
        %v966 = vpop.permute.xlu0 %965
        %967 = vrot.lane.b32.xlu0 %v793, 120
        %v968 = vpop.permute.xlu0 %967
        %v969 = vsel %vm800, %v966, 0
        %v971 = vsel %vm800, %v968, 0
        %973 = vmatprep.subr.mxu0 0.0
        %974 = vmatpush1.xpose.msra.mxu0 0.0
        %975 = vmatprep.subr.mxu0 0.0
        %976 = vmatpush1.xpose.msra.mxu0 0.0
        %977 = vmatprep.subr.mxu0 0.0
        %978 = vmatpush1.xpose.msra.mxu0 0.0
        %979 = vmatprep.subr.mxu0 0.0
        %980 = vmatpush1.xpose.msra.mxu0 0.0
        %981 = vmatprep.subr.mxu0 0.0
        %982 = vmatpush1.xpose.msra.mxu0 0.0
        %983 = vmatprep.subr.mxu0 0.0
        %984 = vmatpush1.xpose.msra.mxu0 0.0
        %985 = vmatprep.subr.mxu0 0.0
        %986 = vmatpush1.xpose.msra.mxu0 0.0
        %987 = vmatprep.subr.mxu0 0.0
        %988 = vmatpush1.xpose.msra.mxu0 0.0
        %989 = vmatprep.subr.mxu0 0.0
        %990 = vmatpush1.xpose.msra.mxu0 0.0
        %991 = vmatprep.subr.mxu0 0.0
        %992 = vmatpush1.xpose.msra.mxu0 0.0
        %993 = vmatprep.subr.mxu0 0.0
        %994 = vmatpush1.xpose.msra.mxu0 0.0
        %995 = vmatprep.subr.mxu0 0.0
        %996 = vmatpush1.xpose.msra.mxu0 0.0
        %997 = vmatprep.subr.mxu0 0.0
        %998 = vmatpush1.xpose.msra.mxu0 0.0
        %999 = vmatprep.subr.mxu0 0.0
        %1000 = vmatpush1.xpose.msra.mxu0 0.0
        %1001 = vmatprep.subr.mxu0 0.0
        %1002 = vmatpush1.xpose.msra.mxu0 0.0
        %1003 = vmatprep.subr.mxu0 0.0
        %1004 = vmatpush1.xpose.msra.mxu0 %v971
        %1005 = vmatprep.subr.mxu0 0.0
        %1006 = vmatpush2.xpose.msra.mxu0 0.0
        %1007 = vmatprep.subr.mxu0 0.0
        %1008 = vmatpush2.xpose.msra.mxu0 0.0
        %1009 = vmatprep.subr.mxu0 0.0
        %1010 = vmatpush2.xpose.msra.mxu0 0.0
        %1011 = vmatprep.subr.mxu0 0.0
        %1012 = vmatpush2.xpose.msra.mxu0 0.0
        %1013 = vmatprep.subr.mxu0 0.0
        %1014 = vmatpush2.xpose.msra.mxu0 0.0
        %1015 = vmatprep.subr.mxu0 0.0
        %1016 = vmatpush2.xpose.msra.mxu0 0.0
        %1017 = vmatprep.subr.mxu0 0.0
        %1018 = vmatpush2.xpose.msra.mxu0 0.0
        %1019 = vmatprep.subr.mxu0 0.0
        %1020 = vmatpush2.xpose.msra.mxu0 0.0
        %1021 = vmatprep.subr.mxu0 0.0
        %1022 = vmatpush2.xpose.msra.mxu0 0.0
        %1023 = vmatprep.subr.mxu0 0.0
        %1024 = vmatpush2.xpose.msra.mxu0 0.0
        %1025 = vmatprep.subr.mxu0 0.0
        %1026 = vmatpush2.xpose.msra.mxu0 0.0
        %1027 = vmatprep.subr.mxu0 0.0
        %1028 = vmatpush2.xpose.msra.mxu0 0.0
        %1029 = vmatprep.subr.mxu0 0.0
        %1030 = vmatpush2.xpose.msra.mxu0 0.0
        %1031 = vmatprep.subr.mxu0 0.0
        %1032 = vmatpush2.xpose.msra.mxu0 0.0
        %1033 = vmatprep.subr.mxu0 0.0
        %1034 = vmatpush2.xpose.msra.mxu0 0.0
        %1035 = vmatprep.subr.mxu0 0.0
        %1036 = vmatpush2.xpose.msra.mxu0 0.0
        %1037 = vmatprep.mubr.f32.mxu0 0.0
        %1038 = vmatmul.mubr.f32.gmra.mxu0 %v969
        %v1039 = vpop.f32.mrf.mxu0
        %v1040 = vadd.f32 %v626, %v1039
        %v1041 = vpop.f32.mrf.mxu0
        %1042 = vdwg.mxu0
        %v1043 = vsel %vm800, %v1040, -inf
        %1044 = vmax.xlane.f32.xlu0 %v1043
        %v1045 = vpop.xlane.xlu0 %1044
        %v1046 = vsub.f32 %v1040, %v1045
        %v1047 = vmul.f32 %v1046, 1.442695
        %v1048 = vpow.pop %v1047
        %v1049 = vsel %vm800, %v1048, 0.0
        %1050 = vadd.xlane.f32.xlu0 %v1049
        %v1051 = vpop.xlane.xlu0 %1050
        %v1052 = vrcp.pop %v1051
        %v1053 = vmul.f32 %v1048, %v1052
        %s1054 = scalar_lea.vmem %s611, 8 [#allocation18]
        %1055 = vst.msk [vmem:[%s1054] sm:$0xff] %vm800, %v1053
        %1056 = vrot.lane.b32.xlu0 %v793, 88
        %v1057 = vpop.permute.xlu0 %1056
        %v1060 = vsel %vm800, %v1053, 0
        %1062 = vmatprep.subr.mxu0 0.0
        %1063 = vmatpush1.msra.mxu0 0.0
        %1064 = vmatprep.subr.mxu0 0.0
        %1065 = vmatpush1.msra.mxu0 0.0
        %1066 = vmatprep.subr.mxu0 0.0
        %1067 = vmatpush1.msra.mxu0 0.0
        %1068 = vmatprep.subr.mxu0 0.0
        %1069 = vmatpush1.msra.mxu0 0.0
        %1070 = vmatprep.subr.mxu0 0.0
        %1071 = vmatpush1.msra.mxu0 0.0
        %1072 = vmatprep.subr.mxu0 0.0
        %1073 = vmatpush1.msra.mxu0 0.0
        %1074 = vmatprep.subr.mxu0 0.0
        %1075 = vmatpush1.msra.mxu0 0.0
        %1076 = vmatprep.subr.mxu0 0.0
        %1077 = vmatpush1.msra.mxu0 0.0
        %1078 = vmatprep.subr.mxu0 0.0
        %1079 = vmatpush1.msra.mxu0 0.0
        %1080 = vmatprep.subr.mxu0 0.0
        %1081 = vmatpush1.msra.mxu0 0.0
        %1082 = vmatprep.subr.mxu0 0.0
        %1083 = vmatpush1.msra.mxu0 0.0
        %1084 = vmatprep.subr.mxu0 0.0
        %1085 = vmatpush1.msra.mxu0 0.0
        %1086 = vmatprep.subr.mxu0 0.0
        %1087 = vmatpush1.msra.mxu0 0.0
        %1088 = vmatprep.subr.mxu0 0.0
        %1089 = vmatpush1.msra.mxu0 0.0
        %1090 = vmatprep.subr.mxu0 0.0
        %1091 = vmatpush1.msra.mxu0 0.0
        %1092 = vmatprep.subr.mxu0 0.0
        %1093 = vmatpush1.msra.mxu0 %v1057
        %1094 = vmatprep.subr.mxu0 0.0
        %1095 = vmatpush2.msra.mxu0 0.0
        %1096 = vmatprep.subr.mxu0 0.0
        %1097 = vmatpush2.msra.mxu0 0.0
        %1098 = vmatprep.subr.mxu0 0.0
        %1099 = vmatpush2.msra.mxu0 0.0
        %1100 = vmatprep.subr.mxu0 0.0
        %1101 = vmatpush2.msra.mxu0 0.0
        %1102 = vmatprep.subr.mxu0 0.0
        %1103 = vmatpush2.msra.mxu0 0.0
        %1104 = vmatprep.subr.mxu0 0.0
        %1105 = vmatpush2.msra.mxu0 0.0
        %1106 = vmatprep.subr.mxu0 0.0
        %1107 = vmatpush2.msra.mxu0 0.0
        %1108 = vmatprep.subr.mxu0 0.0
        %1109 = vmatpush2.msra.mxu0 0.0
        %1110 = vmatprep.subr.mxu0 0.0
        %1111 = vmatpush2.msra.mxu0 0.0
        %1112 = vmatprep.subr.mxu0 0.0
        %1113 = vmatpush2.msra.mxu0 0.0
        %1114 = vmatprep.subr.mxu0 0.0
        %1115 = vmatpush2.msra.mxu0 0.0
        %1116 = vmatprep.subr.mxu0 0.0
        %1117 = vmatpush2.msra.mxu0 0.0
        %1118 = vmatprep.subr.mxu0 0.0
        %1119 = vmatpush2.msra.mxu0 0.0
        %1120 = vmatprep.subr.mxu0 0.0
        %1121 = vmatpush2.msra.mxu0 0.0
        %1122 = vmatprep.subr.mxu0 0.0
        %1123 = vmatpush2.msra.mxu0 0.0
        %1124 = vmatprep.subr.mxu0 0.0
        %1125 = vmatpush2.msra.mxu0 0.0
        %1126 = vmatprep.mubr.f32.mxu0 0.0
        %1127 = vmatmul.mubr.f32.gmra.mxu0 %v1060
        %v1128 = vpop.f32.mrf.mxu0
        %v1129 = vadd.f32 0.0, %v1128
        %v1130 = vpop.f32.mrf.mxu0
        %1131 = vdwg.mxu0
        %v1133 = vsel %vm800, %v1129, 0
        %1135 = vmatprep.subr.mxu0 0.0
        %1136 = vmatpush1.msra.mxu0 0.0
        %1137 = vmatprep.subr.mxu0 0.0
        %1138 = vmatpush1.msra.mxu0 0.0
        %1139 = vmatprep.subr.mxu0 0.0
        %1140 = vmatpush1.msra.mxu0 0.0
        %1141 = vmatprep.subr.mxu0 0.0
        %1142 = vmatpush1.msra.mxu0 0.0
        %1143 = vmatprep.subr.mxu0 0.0
        %1144 = vmatpush1.msra.mxu0 0.0
        %1145 = vmatprep.subr.mxu0 0.0
        %1146 = vmatpush1.msra.mxu0 0.0
        %1147 = vmatprep.subr.mxu0 0.0
        %1148 = vmatpush1.msra.mxu0 0.0
        %1149 = vmatprep.subr.mxu0 0.0
        %1150 = vmatpush1.msra.mxu0 0.0
        %1151 = vmatprep.subr.mxu0 0.0
        %1152 = vmatpush1.msra.mxu0 0.0
        %1153 = vmatprep.subr.mxu0 0.0
        %1154 = vmatpush1.msra.mxu0 0.0
        %1155 = vmatprep.subr.mxu0 0.0
        %1156 = vmatpush1.msra.mxu0 0.0
        %1157 = vmatprep.subr.mxu0 0.0
        %1158 = vmatpush1.msra.mxu0 0.0
        %1159 = vmatprep.subr.mxu0 0.0
        %1160 = vmatpush1.msra.mxu0 0.0
        %1161 = vmatprep.subr.mxu0 0.0
        %1162 = vmatpush1.msra.mxu0 0.0
        %1163 = vmatprep.subr.mxu0 0.0
        %1164 = vmatpush1.msra.mxu0 0.0
        %1165 = vmatprep.subr.mxu0 0.0
        %1166 = vmatpush1.msra.mxu0 %v797
        %1167 = vmatprep.subr.mxu0 0.0
        %1168 = vmatpush2.msra.mxu0 0.0
        %1169 = vmatprep.subr.mxu0 0.0
        %1170 = vmatpush2.msra.mxu0 0.0
        %1171 = vmatprep.subr.mxu0 0.0
        %1172 = vmatpush2.msra.mxu0 0.0
        %1173 = vmatprep.subr.mxu0 0.0
        %1174 = vmatpush2.msra.mxu0 0.0
        %1175 = vmatprep.subr.mxu0 0.0
        %1176 = vmatpush2.msra.mxu0 0.0
        %1177 = vmatprep.subr.mxu0 0.0
        %1178 = vmatpush2.msra.mxu0 0.0
        %1179 = vmatprep.subr.mxu0 0.0
        %1180 = vmatpush2.msra.mxu0 0.0
        %1181 = vmatprep.subr.mxu0 0.0
        %1182 = vmatpush2.msra.mxu0 0.0
        %1183 = vmatprep.subr.mxu0 0.0
        %1184 = vmatpush2.msra.mxu0 0.0
        %1185 = vmatprep.subr.mxu0 0.0
        %1186 = vmatpush2.msra.mxu0 0.0
        %1187 = vmatprep.subr.mxu0 0.0
        %1188 = vmatpush2.msra.mxu0 0.0
        %1189 = vmatprep.subr.mxu0 0.0
        %1190 = vmatpush2.msra.mxu0 0.0
        %1191 = vmatprep.subr.mxu0 0.0
        %1192 = vmatpush2.msra.mxu0 0.0
        %1193 = vmatprep.subr.mxu0 0.0
        %1194 = vmatpush2.msra.mxu0 0.0
        %1195 = vmatprep.subr.mxu0 0.0
        %1196 = vmatpush2.msra.mxu0 0.0
        %1197 = vmatprep.subr.mxu0 0.0
        %1198 = vmatpush2.msra.mxu0 0.0
        %1199 = vmatprep.mubr.f32.mxu0 0.0
        %1200 = vmatmul.mubr.f32.gmra.mxu0 %v1133
        %v1201 = vpop.f32.mrf.mxu0
        %v1202 = vadd.f32 0.0, %v1201
        %v1203 = vpop.f32.mrf.mxu0
        %1204 = vdwg.mxu0
        %v1206 = vsel %vm800, %v962, 0
        %1208 = vmatprep.subr.mxu0 0.0
        %1209 = vmatpush1.msra.mxu0 0.0
        %1210 = vmatprep.subr.mxu0 0.0
        %1211 = vmatpush1.msra.mxu0 0.0
        %1212 = vmatprep.subr.mxu0 0.0
        %1213 = vmatpush1.msra.mxu0 0.0
        %1214 = vmatprep.subr.mxu0 0.0
        %1215 = vmatpush1.msra.mxu0 0.0
        %1216 = vmatprep.subr.mxu0 0.0
        %1217 = vmatpush1.msra.mxu0 0.0
        %1218 = vmatprep.subr.mxu0 0.0
        %1219 = vmatpush1.msra.mxu0 0.0
        %1220 = vmatprep.subr.mxu0 0.0
        %1221 = vmatpush1.msra.mxu0 0.0
        %1222 = vmatprep.subr.mxu0 0.0
        %1223 = vmatpush1.msra.mxu0 0.0
        %1224 = vmatprep.subr.mxu0 0.0
        %1225 = vmatpush1.msra.mxu0 0.0
        %1226 = vmatprep.subr.mxu0 0.0
        %1227 = vmatpush1.msra.mxu0 0.0
        %1228 = vmatprep.subr.mxu0 0.0
        %1229 = vmatpush1.msra.mxu0 0.0
        %1230 = vmatprep.subr.mxu0 0.0
        %1231 = vmatpush1.msra.mxu0 0.0
        %1232 = vmatprep.subr.mxu0 0.0
        %1233 = vmatpush1.msra.mxu0 0.0
        %1234 = vmatprep.subr.mxu0 0.0
        %1235 = vmatpush1.msra.mxu0 0.0
        %1236 = vmatprep.subr.mxu0 0.0
        %1237 = vmatpush1.msra.mxu0 0.0
        %1238 = vmatprep.subr.mxu0 0.0
        %1239 = vmatpush1.msra.mxu0 %v796
        %1240 = vmatprep.subr.mxu0 0.0
        %1241 = vmatpush2.msra.mxu0 0.0
        %1242 = vmatprep.subr.mxu0 0.0
        %1243 = vmatpush2.msra.mxu0 0.0
        %1244 = vmatprep.subr.mxu0 0.0
        %1245 = vmatpush2.msra.mxu0 0.0
        %1246 = vmatprep.subr.mxu0 0.0
        %1247 = vmatpush2.msra.mxu0 0.0
        %1248 = vmatprep.subr.mxu0 0.0
        %1249 = vmatpush2.msra.mxu0 0.0
        %1250 = vmatprep.subr.mxu0 0.0
        %1251 = vmatpush2.msra.mxu0 0.0
        %1252 = vmatprep.subr.mxu0 0.0
        %1253 = vmatpush2.msra.mxu0 0.0
        %1254 = vmatprep.subr.mxu0 0.0
        %1255 = vmatpush2.msra.mxu0 0.0
        %1256 = vmatprep.subr.mxu0 0.0
        %1257 = vmatpush2.msra.mxu0 0.0
        %1258 = vmatprep.subr.mxu0 0.0
        %1259 = vmatpush2.msra.mxu0 0.0
        %1260 = vmatprep.subr.mxu0 0.0
        %1261 = vmatpush2.msra.mxu0 0.0
        %1262 = vmatprep.subr.mxu0 0.0
        %1263 = vmatpush2.msra.mxu0 0.0
        %1264 = vmatprep.subr.mxu0 0.0
        %1265 = vmatpush2.msra.mxu0 0.0
        %1266 = vmatprep.subr.mxu0 0.0
        %1267 = vmatpush2.msra.mxu0 0.0
        %1268 = vmatprep.subr.mxu0 0.0
        %1269 = vmatpush2.msra.mxu0 0.0
        %1270 = vmatprep.subr.mxu0 0.0
        %1271 = vmatpush2.msra.mxu0 0.0
        %1272 = vmatprep.mubr.f32.mxu0 0.0
        %1273 = vmatmul.mubr.f32.gmra.mxu0 %v1206
        %v1274 = vpop.f32.mrf.mxu0
        %v1275 = vadd.f32 %v1202, %v1274
        %v1276 = vpop.f32.mrf.mxu0
        %1277 = vdwg.mxu0
        %1278 = vrot.lane.b32.xlu0 %v709, 112
        %v1279 = vpop.permute.xlu0 %1278
        %1280 = vrot.lane.b32.xlu0 %v793, 112
        %v1281 = vpop.permute.xlu0 %1280
        %v1282 = vsel %vm800, %v1279, 0
        %v1284 = vsel %vm800, %v1281, 0
        %1286 = vmatprep.subr.mxu0 0.0
        %1287 = vmatpush1.xpose.msra.mxu0 0.0
        %1288 = vmatprep.subr.mxu0 0.0
        %1289 = vmatpush1.xpose.msra.mxu0 0.0
        %1290 = vmatprep.subr.mxu0 0.0
        %1291 = vmatpush1.xpose.msra.mxu0 0.0
        %1292 = vmatprep.subr.mxu0 0.0
        %1293 = vmatpush1.xpose.msra.mxu0 0.0
        %1294 = vmatprep.subr.mxu0 0.0
        %1295 = vmatpush1.xpose.msra.mxu0 0.0
        %1296 = vmatprep.subr.mxu0 0.0
        %1297 = vmatpush1.xpose.msra.mxu0 0.0
        %1298 = vmatprep.subr.mxu0 0.0
        %1299 = vmatpush1.xpose.msra.mxu0 0.0
        %1300 = vmatprep.subr.mxu0 0.0
        %1301 = vmatpush1.xpose.msra.mxu0 0.0
        %1302 = vmatprep.subr.mxu0 0.0
        %1303 = vmatpush1.xpose.msra.mxu0 0.0
        %1304 = vmatprep.subr.mxu0 0.0
        %1305 = vmatpush1.xpose.msra.mxu0 0.0
        %1306 = vmatprep.subr.mxu0 0.0
        %1307 = vmatpush1.xpose.msra.mxu0 0.0
        %1308 = vmatprep.subr.mxu0 0.0
        %1309 = vmatpush1.xpose.msra.mxu0 0.0
        %1310 = vmatprep.subr.mxu0 0.0
        %1311 = vmatpush1.xpose.msra.mxu0 0.0
        %1312 = vmatprep.subr.mxu0 0.0
        %1313 = vmatpush1.xpose.msra.mxu0 0.0
        %1314 = vmatprep.subr.mxu0 0.0
        %1315 = vmatpush1.xpose.msra.mxu0 0.0
        %1316 = vmatprep.subr.mxu0 0.0
        %1317 = vmatpush1.xpose.msra.mxu0 %v1284
        %1318 = vmatprep.subr.mxu0 0.0
        %1319 = vmatpush2.xpose.msra.mxu0 0.0
        %1320 = vmatprep.subr.mxu0 0.0
        %1321 = vmatpush2.xpose.msra.mxu0 0.0
        %1322 = vmatprep.subr.mxu0 0.0
        %1323 = vmatpush2.xpose.msra.mxu0 0.0
        %1324 = vmatprep.subr.mxu0 0.0
        %1325 = vmatpush2.xpose.msra.mxu0 0.0
        %1326 = vmatprep.subr.mxu0 0.0
        %1327 = vmatpush2.xpose.msra.mxu0 0.0
        %1328 = vmatprep.subr.mxu0 0.0
        %1329 = vmatpush2.xpose.msra.mxu0 0.0
        %1330 = vmatprep.subr.mxu0 0.0
        %1331 = vmatpush2.xpose.msra.mxu0 0.0
        %1332 = vmatprep.subr.mxu0 0.0
        %1333 = vmatpush2.xpose.msra.mxu0 0.0
        %1334 = vmatprep.subr.mxu0 0.0
        %1335 = vmatpush2.xpose.msra.mxu0 0.0
        %1336 = vmatprep.subr.mxu0 0.0
        %1337 = vmatpush2.xpose.msra.mxu0 0.0
        %1338 = vmatprep.subr.mxu0 0.0
        %1339 = vmatpush2.xpose.msra.mxu0 0.0
        %1340 = vmatprep.subr.mxu0 0.0
        %1341 = vmatpush2.xpose.msra.mxu0 0.0
        %1342 = vmatprep.subr.mxu0 0.0
        %1343 = vmatpush2.xpose.msra.mxu0 0.0
        %1344 = vmatprep.subr.mxu0 0.0
        %1345 = vmatpush2.xpose.msra.mxu0 0.0
        %1346 = vmatprep.subr.mxu0 0.0
        %1347 = vmatpush2.xpose.msra.mxu0 0.0
        %1348 = vmatprep.subr.mxu0 0.0
        %1349 = vmatpush2.xpose.msra.mxu0 0.0
        %1350 = vmatprep.mubr.f32.mxu0 0.0
        %1351 = vmatmul.mubr.f32.gmra.mxu0 %v1282
        %v1352 = vpop.f32.mrf.mxu0
        %v1353 = vadd.f32 %v626, %v1352
        %v1354 = vpop.f32.mrf.mxu0
        %1355 = vdwg.mxu0
        %v1356 = vsel %vm800, %v1353, -inf
        %1357 = vmax.xlane.f32.xlu0 %v1356
        %v1358 = vpop.xlane.xlu0 %1357
        %v1359 = vsub.f32 %v1353, %v1358
        %v1360 = vmul.f32 %v1359, 1.442695
        %v1361 = vpow.pop %v1360
        %v1362 = vsel %vm800, %v1361, 0.0
        %1363 = vadd.xlane.f32.xlu0 %v1362
        %v1364 = vpop.xlane.xlu0 %1363
        %v1365 = vrcp.pop %v1364
        %v1366 = vmul.f32 %v1361, %v1365
        %s1367 = scalar_lea.vmem %s611, 16 [#allocation18]
        %1368 = vst.msk [vmem:[%s1367] sm:$0xff] %vm800, %v1366
        %1369 = vrot.lane.b32.xlu0 %v793, 80
        %v1370 = vpop.permute.xlu0 %1369
        %v1373 = vsel %vm800, %v1366, 0
        %1375 = vmatprep.subr.mxu0 0.0
        %1376 = vmatpush1.msra.mxu0 0.0
        %1377 = vmatprep.subr.mxu0 0.0
        %1378 = vmatpush1.msra.mxu0 0.0
        %1379 = vmatprep.subr.mxu0 0.0
        %1380 = vmatpush1.msra.mxu0 0.0
        %1381 = vmatprep.subr.mxu0 0.0
        %1382 = vmatpush1.msra.mxu0 0.0
        %1383 = vmatprep.subr.mxu0 0.0
        %1384 = vmatpush1.msra.mxu0 0.0
        %1385 = vmatprep.subr.mxu0 0.0
        %1386 = vmatpush1.msra.mxu0 0.0
        %1387 = vmatprep.subr.mxu0 0.0
        %1388 = vmatpush1.msra.mxu0 0.0
        %1389 = vmatprep.subr.mxu0 0.0
        %1390 = vmatpush1.msra.mxu0 0.0
        %1391 = vmatprep.subr.mxu0 0.0
        %1392 = vmatpush1.msra.mxu0 0.0
        %1393 = vmatprep.subr.mxu0 0.0
        %1394 = vmatpush1.msra.mxu0 0.0
        %1395 = vmatprep.subr.mxu0 0.0
        %1396 = vmatpush1.msra.mxu0 0.0
        %1397 = vmatprep.subr.mxu0 0.0
        %1398 = vmatpush1.msra.mxu0 0.0
        %1399 = vmatprep.subr.mxu0 0.0
        %1400 = vmatpush1.msra.mxu0 0.0
        %1401 = vmatprep.subr.mxu0 0.0
        %1402 = vmatpush1.msra.mxu0 0.0
        %1403 = vmatprep.subr.mxu0 0.0
        %1404 = vmatpush1.msra.mxu0 0.0
        %1405 = vmatprep.subr.mxu0 0.0
        %1406 = vmatpush1.msra.mxu0 %v1370
        %1407 = vmatprep.subr.mxu0 0.0
        %1408 = vmatpush2.msra.mxu0 0.0
        %1409 = vmatprep.subr.mxu0 0.0
        %1410 = vmatpush2.msra.mxu0 0.0
        %1411 = vmatprep.subr.mxu0 0.0
        %1412 = vmatpush2.msra.mxu0 0.0
        %1413 = vmatprep.subr.mxu0 0.0
        %1414 = vmatpush2.msra.mxu0 0.0
        %1415 = vmatprep.subr.mxu0 0.0
        %1416 = vmatpush2.msra.mxu0 0.0
        %1417 = vmatprep.subr.mxu0 0.0
        %1418 = vmatpush2.msra.mxu0 0.0
        %1419 = vmatprep.subr.mxu0 0.0
        %1420 = vmatpush2.msra.mxu0 0.0
        %1421 = vmatprep.subr.mxu0 0.0
        %1422 = vmatpush2.msra.mxu0 0.0
        %1423 = vmatprep.subr.mxu0 0.0
        %1424 = vmatpush2.msra.mxu0 0.0
        %1425 = vmatprep.subr.mxu0 0.0
        %1426 = vmatpush2.msra.mxu0 0.0
        %1427 = vmatprep.subr.mxu0 0.0
        %1428 = vmatpush2.msra.mxu0 0.0
        %1429 = vmatprep.subr.mxu0 0.0
        %1430 = vmatpush2.msra.mxu0 0.0
        %1431 = vmatprep.subr.mxu0 0.0
        %1432 = vmatpush2.msra.mxu0 0.0
        %1433 = vmatprep.subr.mxu0 0.0
        %1434 = vmatpush2.msra.mxu0 0.0
        %1435 = vmatprep.subr.mxu0 0.0
        %1436 = vmatpush2.msra.mxu0 0.0
        %1437 = vmatprep.subr.mxu0 0.0
        %1438 = vmatpush2.msra.mxu0 0.0
        %1439 = vmatprep.mubr.f32.mxu0 0.0
        %1440 = vmatmul.mubr.f32.gmra.mxu0 %v1373
        %v1441 = vpop.f32.mrf.mxu0
        %v1442 = vadd.f32 0.0, %v1441
        %v1443 = vpop.f32.mrf.mxu0
        %1444 = vdwg.mxu0
        %v1446 = vsel %vm800, %v1442, 0
        %1448 = vmatprep.subr.mxu0 0.0
        %1449 = vmatpush1.msra.mxu0 0.0
        %1450 = vmatprep.subr.mxu0 0.0
        %1451 = vmatpush1.msra.mxu0 0.0
        %1452 = vmatprep.subr.mxu0 0.0
        %1453 = vmatpush1.msra.mxu0 0.0
        %1454 = vmatprep.subr.mxu0 0.0
        %1455 = vmatpush1.msra.mxu0 0.0
        %1456 = vmatprep.subr.mxu0 0.0
        %1457 = vmatpush1.msra.mxu0 0.0
        %1458 = vmatprep.subr.mxu0 0.0
        %1459 = vmatpush1.msra.mxu0 0.0
        %1460 = vmatprep.subr.mxu0 0.0
        %1461 = vmatpush1.msra.mxu0 0.0
        %1462 = vmatprep.subr.mxu0 0.0
        %1463 = vmatpush1.msra.mxu0 0.0
        %1464 = vmatprep.subr.mxu0 0.0
        %1465 = vmatpush1.msra.mxu0 0.0
        %1466 = vmatprep.subr.mxu0 0.0
        %1467 = vmatpush1.msra.mxu0 0.0
        %1468 = vmatprep.subr.mxu0 0.0
        %1469 = vmatpush1.msra.mxu0 0.0
        %1470 = vmatprep.subr.mxu0 0.0
        %1471 = vmatpush1.msra.mxu0 0.0
        %1472 = vmatprep.subr.mxu0 0.0
        %1473 = vmatpush1.msra.mxu0 0.0
        %1474 = vmatprep.subr.mxu0 0.0
        %1475 = vmatpush1.msra.mxu0 0.0
        %1476 = vmatprep.subr.mxu0 0.0
        %1477 = vmatpush1.msra.mxu0 0.0
        %1478 = vmatprep.subr.mxu0 0.0
        %1479 = vmatpush1.msra.mxu0 %v798
        %1480 = vmatprep.subr.mxu0 0.0
        %1481 = vmatpush2.msra.mxu0 0.0
        %1482 = vmatprep.subr.mxu0 0.0
        %1483 = vmatpush2.msra.mxu0 0.0
        %1484 = vmatprep.subr.mxu0 0.0
        %1485 = vmatpush2.msra.mxu0 0.0
        %1486 = vmatprep.subr.mxu0 0.0
        %1487 = vmatpush2.msra.mxu0 0.0
        %1488 = vmatprep.subr.mxu0 0.0
        %1489 = vmatpush2.msra.mxu0 0.0
        %1490 = vmatprep.subr.mxu0 0.0
        %1491 = vmatpush2.msra.mxu0 0.0
        %1492 = vmatprep.subr.mxu0 0.0
        %1493 = vmatpush2.msra.mxu0 0.0
        %1494 = vmatprep.subr.mxu0 0.0
        %1495 = vmatpush2.msra.mxu0 0.0
        %1496 = vmatprep.subr.mxu0 0.0
        %1497 = vmatpush2.msra.mxu0 0.0
        %1498 = vmatprep.subr.mxu0 0.0
        %1499 = vmatpush2.msra.mxu0 0.0
        %1500 = vmatprep.subr.mxu0 0.0
        %1501 = vmatpush2.msra.mxu0 0.0
        %1502 = vmatprep.subr.mxu0 0.0
        %1503 = vmatpush2.msra.mxu0 0.0
        %1504 = vmatprep.subr.mxu0 0.0
        %1505 = vmatpush2.msra.mxu0 0.0
        %1506 = vmatprep.subr.mxu0 0.0
        %1507 = vmatpush2.msra.mxu0 0.0
        %1508 = vmatprep.subr.mxu0 0.0
        %1509 = vmatpush2.msra.mxu0 0.0
        %1510 = vmatprep.subr.mxu0 0.0
        %1511 = vmatpush2.msra.mxu0 0.0
        %1512 = vmatprep.mubr.f32.mxu0 0.0
        %1513 = vmatmul.mubr.f32.gmra.mxu0 %v1446
        %v1514 = vpop.f32.mrf.mxu0
        %v1515 = vadd.f32 0.0, %v1514
        %v1516 = vpop.f32.mrf.mxu0
        %1517 = vdwg.mxu0
        %v1518 = vadd.f32 %v1275, %v1515
        %1519 = vrot.lane.b32.xlu0 %v709, 104
        %v1520 = vpop.permute.xlu0 %1519
        %1521 = vrot.lane.b32.xlu0 %v793, 104
        %v1522 = vpop.permute.xlu0 %1521
        %v1523 = vsel %vm800, %v1520, 0
        %v1525 = vsel %vm800, %v1522, 0
        %1527 = vmatprep.subr.mxu0 0.0
        %1528 = vmatpush1.xpose.msra.mxu0 0.0
        %1529 = vmatprep.subr.mxu0 0.0
        %1530 = vmatpush1.xpose.msra.mxu0 0.0
        %1531 = vmatprep.subr.mxu0 0.0
        %1532 = vmatpush1.xpose.msra.mxu0 0.0
        %1533 = vmatprep.subr.mxu0 0.0
        %1534 = vmatpush1.xpose.msra.mxu0 0.0
        %1535 = vmatprep.subr.mxu0 0.0
        %1536 = vmatpush1.xpose.msra.mxu0 0.0
        %1537 = vmatprep.subr.mxu0 0.0
        %1538 = vmatpush1.xpose.msra.mxu0 0.0
        %1539 = vmatprep.subr.mxu0 0.0
        %1540 = vmatpush1.xpose.msra.mxu0 0.0
        %1541 = vmatprep.subr.mxu0 0.0
        %1542 = vmatpush1.xpose.msra.mxu0 0.0
        %1543 = vmatprep.subr.mxu0 0.0
        %1544 = vmatpush1.xpose.msra.mxu0 0.0
        %1545 = vmatprep.subr.mxu0 0.0
        %1546 = vmatpush1.xpose.msra.mxu0 0.0
        %1547 = vmatprep.subr.mxu0 0.0
        %1548 = vmatpush1.xpose.msra.mxu0 0.0
        %1549 = vmatprep.subr.mxu0 0.0
        %1550 = vmatpush1.xpose.msra.mxu0 0.0
        %1551 = vmatprep.subr.mxu0 0.0
        %1552 = vmatpush1.xpose.msra.mxu0 0.0
        %1553 = vmatprep.subr.mxu0 0.0
        %1554 = vmatpush1.xpose.msra.mxu0 0.0
        %1555 = vmatprep.subr.mxu0 0.0
        %1556 = vmatpush1.xpose.msra.mxu0 0.0
        %1557 = vmatprep.subr.mxu0 0.0
        %1558 = vmatpush1.xpose.msra.mxu0 %v1525
        %1559 = vmatprep.subr.mxu0 0.0
        %1560 = vmatpush2.xpose.msra.mxu0 0.0
        %1561 = vmatprep.subr.mxu0 0.0
        %1562 = vmatpush2.xpose.msra.mxu0 0.0
        %1563 = vmatprep.subr.mxu0 0.0
        %1564 = vmatpush2.xpose.msra.mxu0 0.0
        %1565 = vmatprep.subr.mxu0 0.0
        %1566 = vmatpush2.xpose.msra.mxu0 0.0
        %1567 = vmatprep.subr.mxu0 0.0
        %1568 = vmatpush2.xpose.msra.mxu0 0.0
        %1569 = vmatprep.subr.mxu0 0.0
        %1570 = vmatpush2.xpose.msra.mxu0 0.0
        %1571 = vmatprep.subr.mxu0 0.0
        %1572 = vmatpush2.xpose.msra.mxu0 0.0
        %1573 = vmatprep.subr.mxu0 0.0
        %1574 = vmatpush2.xpose.msra.mxu0 0.0
        %1575 = vmatprep.subr.mxu0 0.0
        %1576 = vmatpush2.xpose.msra.mxu0 0.0
        %1577 = vmatprep.subr.mxu0 0.0
        %1578 = vmatpush2.xpose.msra.mxu0 0.0
        %1579 = vmatprep.subr.mxu0 0.0
        %1580 = vmatpush2.xpose.msra.mxu0 0.0
        %1581 = vmatprep.subr.mxu0 0.0
        %1582 = vmatpush2.xpose.msra.mxu0 0.0
        %1583 = vmatprep.subr.mxu0 0.0
        %1584 = vmatpush2.xpose.msra.mxu0 0.0
        %1585 = vmatprep.subr.mxu0 0.0
        %1586 = vmatpush2.xpose.msra.mxu0 0.0
        %1587 = vmatprep.subr.mxu0 0.0
        %1588 = vmatpush2.xpose.msra.mxu0 0.0
        %1589 = vmatprep.subr.mxu0 0.0
        %1590 = vmatpush2.xpose.msra.mxu0 0.0
        %1591 = vmatprep.mubr.f32.mxu0 0.0
        %1592 = vmatmul.mubr.f32.gmra.mxu0 %v1523
        %v1593 = vpop.f32.mrf.mxu0
        %v1594 = vadd.f32 %v626, %v1593
        %v1595 = vpop.f32.mrf.mxu0
        %1596 = vdwg.mxu0
        %v1597 = vsel %vm800, %v1594, -inf
        %1598 = vmax.xlane.f32.xlu0 %v1597
        %v1599 = vpop.xlane.xlu0 %1598
        %v1600 = vsub.f32 %v1594, %v1599
        %v1601 = vmul.f32 %v1600, 1.442695
        %v1602 = vpow.pop %v1601
        %v1603 = vsel %vm800, %v1602, 0.0
        %1604 = vadd.xlane.f32.xlu0 %v1603
        %v1605 = vpop.xlane.xlu0 %1604
        %v1606 = vrcp.pop %v1605
        %v1607 = vmul.f32 %v1602, %v1606
        %s1608 = scalar_lea.vmem %s611, 24 [#allocation18]
        %1609 = vst.msk [vmem:[%s1608] sm:$0xff] %vm800, %v1607
        %1610 = vrot.lane.b32.xlu0 %v793, 72
        %v1611 = vpop.permute.xlu0 %1610
        %v1614 = vsel %vm800, %v1607, 0
        %1616 = vmatprep.subr.mxu0 0.0
        %1617 = vmatpush1.msra.mxu0 0.0
        %1618 = vmatprep.subr.mxu0 0.0
        %1619 = vmatpush1.msra.mxu0 0.0
        %1620 = vmatprep.subr.mxu0 0.0
        %1621 = vmatpush1.msra.mxu0 0.0
        %1622 = vmatprep.subr.mxu0 0.0
        %1623 = vmatpush1.msra.mxu0 0.0
        %1624 = vmatprep.subr.mxu0 0.0
        %1625 = vmatpush1.msra.mxu0 0.0
        %1626 = vmatprep.subr.mxu0 0.0
        %1627 = vmatpush1.msra.mxu0 0.0
        %1628 = vmatprep.subr.mxu0 0.0
        %1629 = vmatpush1.msra.mxu0 0.0
        %1630 = vmatprep.subr.mxu0 0.0
        %1631 = vmatpush1.msra.mxu0 0.0
        %1632 = vmatprep.subr.mxu0 0.0
        %1633 = vmatpush1.msra.mxu0 0.0
        %1634 = vmatprep.subr.mxu0 0.0
        %1635 = vmatpush1.msra.mxu0 0.0
        %1636 = vmatprep.subr.mxu0 0.0
        %1637 = vmatpush1.msra.mxu0 0.0
        %1638 = vmatprep.subr.mxu0 0.0
        %1639 = vmatpush1.msra.mxu0 0.0
        %1640 = vmatprep.subr.mxu0 0.0
        %1641 = vmatpush1.msra.mxu0 0.0
        %1642 = vmatprep.subr.mxu0 0.0
        %1643 = vmatpush1.msra.mxu0 0.0
        %1644 = vmatprep.subr.mxu0 0.0
        %1645 = vmatpush1.msra.mxu0 0.0
        %1646 = vmatprep.subr.mxu0 0.0
        %1647 = vmatpush1.msra.mxu0 %v1611
        %1648 = vmatprep.subr.mxu0 0.0
        %1649 = vmatpush2.msra.mxu0 0.0
        %1650 = vmatprep.subr.mxu0 0.0
        %1651 = vmatpush2.msra.mxu0 0.0
        %1652 = vmatprep.subr.mxu0 0.0
        %1653 = vmatpush2.msra.mxu0 0.0
        %1654 = vmatprep.subr.mxu0 0.0
        %1655 = vmatpush2.msra.mxu0 0.0
        %1656 = vmatprep.subr.mxu0 0.0
        %1657 = vmatpush2.msra.mxu0 0.0
        %1658 = vmatprep.subr.mxu0 0.0
        %1659 = vmatpush2.msra.mxu0 0.0
        %1660 = vmatprep.subr.mxu0 0.0
        %1661 = vmatpush2.msra.mxu0 0.0
        %1662 = vmatprep.subr.mxu0 0.0
        %1663 = vmatpush2.msra.mxu0 0.0
        %1664 = vmatprep.subr.mxu0 0.0
        %1665 = vmatpush2.msra.mxu0 0.0
        %1666 = vmatprep.subr.mxu0 0.0
        %1667 = vmatpush2.msra.mxu0 0.0
        %1668 = vmatprep.subr.mxu0 0.0
        %1669 = vmatpush2.msra.mxu0 0.0
        %1670 = vmatprep.subr.mxu0 0.0
        %1671 = vmatpush2.msra.mxu0 0.0
        %1672 = vmatprep.subr.mxu0 0.0
        %1673 = vmatpush2.msra.mxu0 0.0
        %1674 = vmatprep.subr.mxu0 0.0
        %1675 = vmatpush2.msra.mxu0 0.0
        %1676 = vmatprep.subr.mxu0 0.0
        %1677 = vmatpush2.msra.mxu0 0.0
        %1678 = vmatprep.subr.mxu0 0.0
        %1679 = vmatpush2.msra.mxu0 0.0
        %1680 = vmatprep.mubr.f32.mxu0 0.0
        %1681 = vmatmul.mubr.f32.gmra.mxu0 %v1614
        %v1682 = vpop.f32.mrf.mxu0
        %v1683 = vadd.f32 0.0, %v1682
        %v1684 = vpop.f32.mrf.mxu0
        %1685 = vdwg.mxu0
        %v1687 = vsel %vm800, %v1683, 0
        %1689 = vmatprep.subr.mxu0 0.0
        %1690 = vmatpush1.msra.mxu0 0.0
        %1691 = vmatprep.subr.mxu0 0.0
        %1692 = vmatpush1.msra.mxu0 0.0
        %1693 = vmatprep.subr.mxu0 0.0
        %1694 = vmatpush1.msra.mxu0 0.0
        %1695 = vmatprep.subr.mxu0 0.0
        %1696 = vmatpush1.msra.mxu0 0.0
        %1697 = vmatprep.subr.mxu0 0.0
        %1698 = vmatpush1.msra.mxu0 0.0
        %1699 = vmatprep.subr.mxu0 0.0
        %1700 = vmatpush1.msra.mxu0 0.0
        %1701 = vmatprep.subr.mxu0 0.0
        %1702 = vmatpush1.msra.mxu0 0.0
        %1703 = vmatprep.subr.mxu0 0.0
        %1704 = vmatpush1.msra.mxu0 0.0
        %1705 = vmatprep.subr.mxu0 0.0
        %1706 = vmatpush1.msra.mxu0 0.0
        %1707 = vmatprep.subr.mxu0 0.0
        %1708 = vmatpush1.msra.mxu0 0.0
        %1709 = vmatprep.subr.mxu0 0.0
        %1710 = vmatpush1.msra.mxu0 0.0
        %1711 = vmatprep.subr.mxu0 0.0
        %1712 = vmatpush1.msra.mxu0 0.0
        %1713 = vmatprep.subr.mxu0 0.0
        %1714 = vmatpush1.msra.mxu0 0.0
        %1715 = vmatprep.subr.mxu0 0.0
        %1716 = vmatpush1.msra.mxu0 0.0
        %1717 = vmatprep.subr.mxu0 0.0
        %1718 = vmatpush1.msra.mxu0 0.0
        %1719 = vmatprep.subr.mxu0 0.0
        %1720 = vmatpush1.msra.mxu0 %v799
        %1721 = vmatprep.subr.mxu0 0.0
        %1722 = vmatpush2.msra.mxu0 0.0
        %1723 = vmatprep.subr.mxu0 0.0
        %1724 = vmatpush2.msra.mxu0 0.0
        %1725 = vmatprep.subr.mxu0 0.0
        %1726 = vmatpush2.msra.mxu0 0.0
        %1727 = vmatprep.subr.mxu0 0.0
        %1728 = vmatpush2.msra.mxu0 0.0
        %1729 = vmatprep.subr.mxu0 0.0
        %1730 = vmatpush2.msra.mxu0 0.0
        %1731 = vmatprep.subr.mxu0 0.0
        %1732 = vmatpush2.msra.mxu0 0.0
        %1733 = vmatprep.subr.mxu0 0.0
        %1734 = vmatpush2.msra.mxu0 0.0
        %1735 = vmatprep.subr.mxu0 0.0
        %1736 = vmatpush2.msra.mxu0 0.0
        %1737 = vmatprep.subr.mxu0 0.0
        %1738 = vmatpush2.msra.mxu0 0.0
        %1739 = vmatprep.subr.mxu0 0.0
        %1740 = vmatpush2.msra.mxu0 0.0
        %1741 = vmatprep.subr.mxu0 0.0
        %1742 = vmatpush2.msra.mxu0 0.0
        %1743 = vmatprep.subr.mxu0 0.0
        %1744 = vmatpush2.msra.mxu0 0.0
        %1745 = vmatprep.subr.mxu0 0.0
        %1746 = vmatpush2.msra.mxu0 0.0
        %1747 = vmatprep.subr.mxu0 0.0
        %1748 = vmatpush2.msra.mxu0 0.0
        %1749 = vmatprep.subr.mxu0 0.0
        %1750 = vmatpush2.msra.mxu0 0.0
        %1751 = vmatprep.subr.mxu0 0.0
        %1752 = vmatpush2.msra.mxu0 0.0
        %1753 = vmatprep.mubr.f32.mxu0 0.0
        %1754 = vmatmul.mubr.f32.gmra.mxu0 %v1687
        %v1755 = vpop.f32.mrf.mxu0
        %v1756 = vadd.f32 0.0, %v1755
        %v1757 = vpop.f32.mrf.mxu0
        %1758 = vdwg.mxu0
        %v1759 = vadd.f32 %v1518, %v1756
        %v1760 = vld [vmem:[#allocation13] sm:$0x1]
        %v1762 = vlaneseq
        %v1763 = vshrl.u32 %v1762, 7
        %v1764 = vsub.s32 0, %v1763
        %v1765 = vrot.slane %v1760, %v1764
        %v1767 = vadd.f32 %v1759, %v1765
        %v1768 = vadd.f32 %v1767, %v624
        %v1769 = vsel %vm638, %v1768, 0.0
        %1770 = vadd.xlane.f32.xlu0 %v1769
        %v1771 = vpop.xlane.xlu0 %1770
        %v1772 = vrcp.pop 32.0
        %v1773 = vmul.f32 %v1771, %v1772
        %v1774 = vsub.f32 %v1768, %v1773
        %v1775 = vmul.f32 %v1774, %v1774
        %v1776 = vsel %vm638, %v1775, 0.0
        %1777 = vadd.xlane.f32.xlu0 %v1776
        %v1778 = vpop.xlane.xlu0 %1777
        %v1779 = vmul.f32 %v1778, %v1772
        %v1780 = vadd.f32 %v1779, 1e-05
        %v1781 = vrsqrt.pop %v1780
        %v1782 = vmul.f32 %v1774, %v1781
        %v1783 = vld [vmem:[#allocation14] sm:$0x1]
        %v1785 = vlaneseq
        %v1786 = vshrl.u32 %v1785, 7
        %v1787 = vsub.s32 0, %v1786
        %v1788 = vrot.slane %v1783, %v1787
        %v1790 = vmul.f32 %v1782, %v1788
        %v1791 = vld [vmem:[#allocation16] sm:$0x1]
        %v1793 = vlaneseq
        %v1794 = vshrl.u32 %v1793, 7
        %v1795 = vsub.s32 0, %v1794
        %v1796 = vrot.slane %v1791, %v1795
        %v1798 = vadd.f32 %v1790, %v1796
        %v1799 = vld [vmem:[%s623] sm:$0xff]
        %1801 = vset.pattern.permute.xlu0 0
        %1802 = vperm.xlu0 %1801, %v1799
        %v1803 = vpop.permute.xlu0 %1802
        %v1805 = vmul.f32 %v1798, %v1803
        %1806 = vst.msk [vmem:[%s604] sm:$0xff] %vm638, %v1805
        %s1807 = sand.u32 %s318, 1
        %s1808 = scalar_lea.sflag [#allocation4], %s1807
        %s1809 = sand.u32 %s318, 1
        %s1810 = smul.addr %s1809, 8
        %s1811 = scalar_lea.vmem [#allocation17], %s1810
        %s1812 = sand.u32 %s344, 1
        %s1813 = scalar_lea.sflag [#allocation19], %s1812
        %s1814 = sand.u32 %s344, 1
        %s1815 = smul.addr %s1814, 32
        %s1816 = scalar_lea.vmem [#allocation18], %s1815
        // Predicated region
        $region105: #{tpu_custom_call.1} parent=67 // pred_check
          %p1817 = pneg %p328
        $region106: #{tpu_custom_call.1} parent=67 // pred_check_branch
          %1819 = sbr.rel (%p1817) target = $region108
        $region107: #{tpu_custom_call.1} parent=67 // pred_region
          %s1821 = ssub.s32 128, 128
          %1822 = vsyncadd %s1808, %s1821
          %s1823 = smul.addr %s38, 128
          %s1824 = scalar_lea.hbm %s12, %s1823
          %s1826 = sshll.u32 %s1811, 4
          %s1827 = int_to_ptr.vmem [resolvable:$true] %s1826
          %1829 = dma.vmem_to_hbm [thread:$0]  %s1827, 128, %s1824, %s1808
        $region108: #{tpu_custom_call.1} parent=67 // pred_fallthru
          _
        // Predicated region
        $region109: #{tpu_custom_call.1} parent=67 // pred_check
          %p1830 = pneg %p354
        $region110: #{tpu_custom_call.1} parent=67 // pred_check_branch
          %1832 = sbr.rel (%p1830) target = $region112
        $region111: #{tpu_custom_call.1} parent=67 // pred_region
          %s1834 = ssub.s32 512, 512
          %1835 = vsyncadd %s1813, %s1834
          %s1836 = smul.addr %s38, 128
          %s1837 = scalar_lea.hbm %s13, %s1836
          %s1838 = sshll.u32 %s1816, 4
          %s1839 = int_to_ptr.vmem [resolvable:$true] %s1838
          %1844 = dma.vmem_to_hbm [thread:$0]  %s1839, 512, %s1837, %s1813, 128, 256, 8
        $region112: #{tpu_custom_call.1} parent=67 // pred_fallthru
          _
      $region68: #{tpu_custom_call.1} parent=5 // pred_fallthru
        _
      %p1845 = scmp.le.s32.totalorder 2, %s33
      // Predicated region
      $region113: #{tpu_custom_call.1} parent=5 // pred_check
        %p1846 = pneg %p1845
      $region114: #{tpu_custom_call.1} parent=5 // pred_check_branch
        %1848 = sbr.rel (%p1846) target = $region116
      $region115: #{tpu_custom_call.1} parent=5 // pred_region
        %s1849 = ssub.s32 %s33, 2
        // Predicated region
        $region117: #{tpu_custom_call.1} parent=115 // pred_check
          %p1850 = pneg %p334
        $region118: #{tpu_custom_call.1} parent=115 // pred_check_branch
          %1852 = sbr.rel (%p1850) target = $region120
        $region119: #{tpu_custom_call.1} parent=115 // pred_region
          %s1853 = sand.u32 %s319, 1
          %s1854 = scalar_lea.sflag [#allocation4], %s1853
          %s1855 = sand.u32 %s319, 1
          %s1856 = smul.addr %s1855, 8
          %s1857 = scalar_lea.vmem [#allocation17], %s1856
          %1858 = dma.done %s1854, 128
        $region120: #{tpu_custom_call.1} parent=115 // pred_fallthru
          _
        // Predicated region
        $region121: #{tpu_custom_call.1} parent=115 // pred_check
          %p1859 = pneg %p360
        $region122: #{tpu_custom_call.1} parent=115 // pred_check_branch
          %1861 = sbr.rel (%p1859) target = $region124
        $region123: #{tpu_custom_call.1} parent=115 // pred_region
          %s1862 = sand.u32 %s345, 1
          %s1863 = scalar_lea.sflag [#allocation19], %s1862
          %s1864 = sand.u32 %s345, 1
          %s1865 = smul.addr %s1864, 32
          %s1866 = scalar_lea.vmem [#allocation18], %s1865
          %1867 = dma.done %s1863, 512
        $region124: #{tpu_custom_call.1} parent=115 // pred_fallthru
          _
      $region116: #{tpu_custom_call.1} parent=5 // pred_fallthru
        _
    $region6: #{tpu_custom_call.1} parent=1 // loop_footer
      %s37 = sadd.s32 1, %s33
    $region7: #{tpu_custom_call.1} parent=1 // loop_footer_branch
      %32 = sbr.rel target = $region3
    $region8: #{tpu_custom_call.1} parent=1 // loop_exit
      _
    %1868 = vsyncpa [#allocation3], 1
    %s1869 = scalar_lea.sflag [#allocation3], 1
    %1870 = vsyncpa %s1869, 1
    %1871 = vsyncpa [#allocation6], 1
    %1872 = vsyncpa [#allocation9], 1
    %1873 = vsyncpa [#allocation12], 1
    %1874 = vsyncpa [#allocation15], 1
    %1875 = vsyncpa [#allocation4], 1
    %s1876 = scalar_lea.sflag [#allocation4], 1
    %1877 = vsyncpa %s1876, 1
    %1878 = vsyncpa [#allocation19], 1
    %s1879 = scalar_lea.sflag [#allocation19], 1
    %1880 = vsyncpa %s1879, 1

</llo_original>
